<compile_context>
chip_gen: v7x
topology: tpu7x:2x2x1
jax: 0.10.0
libtpu: 0.0.40
codegen_flags: <defaults>
</compile_context>

<pallas_src>
import jax
import jax.numpy as jnp
from jax import lax
from jax.experimental import pallas as pl
from jax.experimental.pallas import tpu as pltpu


def _round_up(x, m):
    return ((x + m - 1) // m) * m


def _lstm_lm_kernel(xg_ref, whh_ref, wfc_ref, bfc_ref, out_ref,
                    hall_scr, h_scr, c_scr):
    """Whole forward pass in one invocation (no grid, everything VMEM-resident).

    xg_ref  : [T*Bp, 4H]  pre-gathered, pre-projected gate inputs (emb@W_ih^T + b),
                          gate-column order (i, f, o, g)
    whh_ref : [H, 4H]     hidden->gates weight (transposed, same gate order)
    wfc_ref : [H, Cp]     fc weight, classes zero-padded to Cp (lane-dense)
    bfc_ref : [1, Cp]     fc bias (f32), padded classes set to -1e30
    out_ref : [T*Bp, Cp]  log-probabilities (padded)
    hall_scr: [T*Bp, H]   all hidden states (for the batched fc epilogue)
    h_scr   : [Bp, H]     recurrent hidden state
    c_scr   : [Bp, H]     recurrent cell state
    """
    Bp, H = h_scr.shape
    T = xg_ref.shape[0] // Bp
    cdt = whh_ref.dtype  # MXU operand dtype (f32 here; bf16 if wrapper casts weights)

    h_scr[...] = jnp.zeros_like(h_scr)
    c_scr[...] = jnp.zeros_like(c_scr)

    # Hoisted lane mask: lanes [0, 3H) are the sigmoid gates (i, f, o), lanes
    # [3H, 4H) the tanh gate (g).  Hoisted because JAX does not CSE
    # broadcast_in_dim across the (unrolled) loop body.
    sig_mask = lax.broadcasted_iota(jnp.int32, (Bp, 4 * H), 1) < 3 * H

    # ---- Recurrence over time; only h @ W_hh^T runs per step ----
    def step(t, carry):
        row = pl.multiple_of(t * Bp, Bp)
        gates = xg_ref[pl.ds(row, Bp), :] + jnp.dot(
            h_scr[...].astype(cdt), whh_ref[...],
            preferred_element_type=jnp.float32)                    # [Bp, 4H] f32
        # One full-vreg sigmoid + one full-vreg tanh + lane-select instead of
        # four sub-vreg (32-of-128-lane) activations on the serial critical path.
        act = jnp.where(sig_mask, jax.nn.sigmoid(gates), jnp.tanh(gates))
        i_g = act[:, 0 * H:1 * H]
        f_g = act[:, 1 * H:2 * H]
        o_g = act[:, 2 * H:3 * H]
        g_g = act[:, 3 * H:4 * H]
        c_new = f_g * c_scr[...] + i_g * g_g
        h_new = o_g * jnp.tanh(c_new)
        c_scr[...] = c_new
        h_scr[...] = h_new
        hall_scr[pl.ds(row, Bp), :] = h_new
        return carry

    # Full unroll only while T is small; partial unroll avoids vreg-spill /
    # code-size blow-up at production sequence lengths.
    lax.fori_loop(0, T, step, 0, unroll=True if T <= 32 else 8)

    # ---- Batched fc + log_softmax over all T*Bp rows, lane-dense store ----
    logits = jnp.dot(hall_scr[...].astype(cdt), wfc_ref[...],
                     preferred_element_type=jnp.float32) + bfc_ref[...]  # [T*Bp, Cp]
    # Padded class lanes carry a -1e30 bias: they never win the max and their
    # exp() underflows to 0, so the softmax reduction is exact over the real C.
    m = jnp.max(logits, axis=-1, keepdims=True)
    z = logits - m
    lse = jnp.log(jnp.sum(jnp.exp(z), axis=-1, keepdims=True))
    out_ref[...] = z - lse


def lstm_lm_forward(x, params, *, matmul_dtype=jnp.float32):
    """Full LstmLM forward pass. x: int32 [B, T]. Returns f32 [B, T, C].

    matmul_dtype: set to jnp.bfloat16 on v6e/v7x at production sizes (MXU operands
    only; accumulation, bias add and log_softmax stay f32).
    """
    emb_table = params["embedding"]        # [V, E]
    w_ih_t = params["w_ih_t"]              # [E, 4H]  (torch gate order i,f,g,o)
    w_hh_t = params["w_hh_t"]              # [H, 4H]
    b_comb = params["b_comb"]              # [1, 4H]
    w_fc_t = params["w_fc_t"]              # [H, C]
    b_fc = params["b_fc"]                  # [1, C]

    B, T = x.shape
    H = w_hh_t.shape[0]
    C = w_fc_t.shape[1]

    # Pad batch to a full 8-sublane tile and classes to a full 128-lane tile so
    # every vector load/store inside the kernel is unmasked / lane-dense.
    Bp = _round_up(max(B, 8), 8)
    Cp = _round_up(max(C, 128), 128)

    # Gate-column permutation (i,f,g,o) -> (i,f,o,g): lets the kernel treat the
    # three sigmoid gates as one contiguous lane block and tanh as the other.
    def perm_gates(a):
        return jnp.concatenate(
            [a[..., :2 * H], a[..., 3 * H:4 * H], a[..., 2 * H:3 * H]], axis=-1)

    w_ih_p = perm_gates(w_ih_t)
    w_hh_p = perm_gates(w_hh_t).astype(matmul_dtype)
    b_p = perm_gates(b_comb)

    # Fold embedding + input projection + bias: [V,E]@[E,4H] + b -> [V,4H].
    # Exact (row gather commutes with the matmul).  Cheap because V is tiny; at
    # large V cache this per-weights instead of recomputing per call.
    xg_table = jnp.dot(emb_table, w_ih_p,
                       precision=jax.lax.Precision.HIGHEST) + b_p      # [V, 4H]

    # Time-major, batch padded to Bp sublanes, flattened to [T*Bp] so the kernel
    # only sees 2-D buffers (no in-kernel 3-D reshapes / relayouts).
    x_tm = jnp.pad(x.T, ((0, 0), (0, Bp - B)))                         # [T, Bp]
    xg_all = jnp.take(xg_table, x_tm.reshape(T * Bp), axis=0)          # [T*Bp, 4H]

    # Lane-dense fc: zero-pad weight columns to a multiple of 128; pad bias with
    # -1e30 so padded logits never affect the log_softmax max/sum.
    w_fc_p = jnp.pad(w_fc_t, ((0, 0), (0, Cp - C))).astype(matmul_dtype)
    b_fc_p = jnp.pad(b_fc, ((0, 0), (0, Cp - C)), constant_values=-1e30)

    # No grid: single invocation, every operand whole-array resident in VMEM.
    # With no pipeline there is nothing to double-buffer (single VMEM copy per
    # operand), and weights / (h,c) state stay resident for the whole recurrence.
    out_flat = pl.pallas_call(
        _lstm_lm_kernel,
        out_shape=jax.ShapeDtypeStruct((T * Bp, Cp), jnp.float32),
        in_specs=[
            pl.BlockSpec(memory_space=pltpu.MemorySpace.VMEM),   # xg_all
            pl.BlockSpec(memory_space=pltpu.MemorySpace.VMEM),   # W_hh^T
            pl.BlockSpec(memory_space=pltpu.MemorySpace.VMEM),   # W_fc^T (padded)
            pl.BlockSpec(memory_space=pltpu.MemorySpace.VMEM),   # b_fc   (padded)
        ],
        out_specs=pl.BlockSpec(memory_space=pltpu.MemorySpace.VMEM),
        scratch_shapes=[
            pltpu.VMEM((T * Bp, H), jnp.float32),                # all hidden states
            pltpu.VMEM((Bp, H), jnp.float32),                    # h state
            pltpu.VMEM((Bp, H), jnp.float32),                    # c state
        ],
    )(xg_all, w_hh_p, w_fc_p, b_fc_p)

    # Un-pad; one tiny transpose back to batch_first [B, T, C].
    out_tm = out_flat.reshape(T, Bp, Cp)[:, :B, :C]
    return jnp.transpose(out_tm, (1, 0, 2))


def lstm_lm_reference(x, params):
    """Pure-JAX reference matching torch semantics (HIGHEST-precision matmuls)."""
    hp = jax.lax.Precision.HIGHEST
    emb = jnp.take(params["embedding"], x, axis=0)        # [B, T, E]
    B, T, E = emb.shape
    H = params["w_hh_t"].shape[0]

    def step(carry, x_t):
        h, c = carry
        gates = (jnp.dot(x_t, params["w_ih_t"], precision=hp)
                 + jnp.dot(h, params["w_hh_t"], precision=hp)
                 + params["b_comb"])
        i = jax.nn.sigmoid(gates[:, 0 * H:1 * H])
        f = jax.nn.sigmoid(gates[:, 1 * H:2 * H])
        g = jnp.tanh(gates[:, 2 * H:3 * H])
        o = jax.nn.sigmoid(gates[:, 3 * H:4 * H])
        c = f * c + i * g
        h = o * jnp.tanh(c)
        return (h, c), h

    h0 = jnp.zeros((B, H), jnp.float32)
    c0 = jnp.zeros((B, H), jnp.float32)
    (_, _), hs = lax.scan(step, (h0, c0), jnp.transpose(emb, (1, 0, 2)))
    hs = jnp.transpose(hs, (1, 0, 2))                     # [B, T, H]
    logits = jnp.dot(hs, params["w_fc_t"], precision=hp) + params["b_fc"]
    return jax.nn.log_softmax(logits, axis=-1)


def init_params(key, num_classes, num_embeddings, embedding_dim, hidden_size):
    """Deterministic synthetic parameters with the same shapes as the torch module."""
    ks = jax.random.split(key, 7)
    V, E, H, C = num_embeddings, embedding_dim, hidden_size, num_classes
    s = 1.0 / jnp.sqrt(jnp.float32(H))
    emb = jax.random.normal(ks[0], (V, E), jnp.float32)                      # nn.Embedding
    w_ih = jax.random.uniform(ks[1], (4 * H, E), jnp.float32, -s, s)         # lstm.weight_ih_l0
    w_hh = jax.random.uniform(ks[2], (4 * H, H), jnp.float32, -s, s)         # lstm.weight_hh_l0
    b_ih = jax.random.uniform(ks[3], (4 * H,), jnp.float32, -s, s)
    b_hh = jax.random.uniform(ks[4], (4 * H,), jnp.float32, -s, s)
    sf = 1.0 / jnp.sqrt(jnp.float32(H))
    w_fc = jax.random.uniform(ks[5], (C, H), jnp.float32, -sf, sf)           # fc.weight
    b_fc = jax.random.uniform(ks[6], (C,), jnp.float32, -sf, sf)             # fc.bias
    return {
        "embedding": emb,
        "w_ih_t": jnp.transpose(w_ih),                  # [E, 4H]
        "w_hh_t": jnp.transpose(w_hh),                  # [H, 4H]
        "b_comb": (b_ih + b_hh)[None, :],               # [1, 4H]
        "w_fc_t": jnp.transpose(w_fc),                  # [H, C]
        "b_fc": b_fc[None, :],                          # [1, C]
    }


if __name__ == "__main__":
    # Small shapes consistent with the module's forward.
    NUM_CLASSES = 50
    NUM_EMBEDDINGS = 50
    EMBEDDING_DIM = 32
    HIDDEN_SIZE = 32
    BATCH = 2
    SEQ = 8

    key = jax.random.PRNGKey(0)
    pkey, xkey = jax.random.split(key)
    params = init_params(pkey, NUM_CLASSES, NUM_EMBEDDINGS, EMBEDDING_DIM, HIDDEN_SIZE)
    x = jax.random.randint(xkey, (BATCH, SEQ), 0, NUM_EMBEDDINGS, dtype=jnp.int32)

    out = jax.jit(lstm_lm_forward)(x, params)
    out = jax.block_until_ready(out)

    ref = lstm_lm_reference(x, params)
    assert out.shape == (BATCH, SEQ, NUM_CLASSES), out.shape
    assert jnp.allclose(out, ref, atol=1e-4, rtol=1e-4), "mismatch vs JAX reference"

    print("KERNEL_OK")
</pallas_src>

<mosaic_0001>
module attributes {stable_mosaic.version = 11 : i64} {
  func.func @_lstm_lm_kernel(%arg0: memref<64x128xf32, #tpu.memory_space<vmem>>, %arg1: memref<32x128xf32, #tpu.memory_space<vmem>>, %arg2: memref<32x128xf32, #tpu.memory_space<vmem>>, %arg3: memref<1x128xf32, #tpu.memory_space<vmem>>, %arg4: memref<64x128xf32, #tpu.memory_space<vmem>>, %arg5: memref<64x32xf32, #tpu.memory_space<vmem>>, %arg6: memref<8x32xf32, #tpu.memory_space<vmem>>, %arg7: memref<8x32xf32, #tpu.memory_space<vmem>>) attributes {dimension_semantics = [], scalar_prefetch = 0 : i64, scratch_operands = 3 : i64, tpu.core_type = #tpu.core_type<tc>} {
    %cst = arith.constant 0.000000e+00 : f32
    %0 = vector.broadcast %cst : f32 to vector<8x32xf32>
    %c0 = arith.constant 0 : index
    %c0_0 = arith.constant 0 : index
    %1 = vector.load %arg6[%c0, %c0_0] : memref<8x32xf32, #tpu.memory_space<vmem>>, vector<8x32xf32>
    tpu.vector_store %arg6[%c0, %c0_0], %0 {strides = array<i32>} : memref<8x32xf32, #tpu.memory_space<vmem>>, vector<8x32xf32>,
    %cst_1 = arith.constant 0.000000e+00 : f32
    %2 = vector.broadcast %cst_1 : f32 to vector<8x32xf32>
    %c0_2 = arith.constant 0 : index
    %c0_3 = arith.constant 0 : index
    %3 = vector.load %arg7[%c0_2, %c0_3] : memref<8x32xf32, #tpu.memory_space<vmem>>, vector<8x32xf32>
    tpu.vector_store %arg7[%c0_2, %c0_3], %2 {strides = array<i32>} : memref<8x32xf32, #tpu.memory_space<vmem>>, vector<8x32xf32>,
    %4 = tpu.iota {dimensions = array<i32: 1>} : vector<8x128xi32>
    %c96_i32 = arith.constant 96 : i32
    %5 = vector.broadcast %c96_i32 : i32 to vector<8x128xi32>
    %6 = arith.cmpi slt, %4, %5 : vector<8x128xi32>
    %c0_i32 = arith.constant 0 : i32
    %c8_i32 = arith.constant 8 : i32
    %7 = arith.muli %c0_i32, %c8_i32 : i32
    %8 = tpu.assume_multiple %7, 8 : i32
    %9 = arith.index_cast %8 : i32 to index
    %c0_4 = arith.constant 0 : index
    %10 = vector.load %arg0[%9, %c0_4] : memref<64x128xf32, #tpu.memory_space<vmem>>, vector<8x128xf32>
    %c0_5 = arith.constant 0 : index
    %c0_6 = arith.constant 0 : index
    %11 = vector.load %arg6[%c0_5, %c0_6] : memref<8x32xf32, #tpu.memory_space<vmem>>, vector<8x32xf32>
    %c0_7 = arith.constant 0 : index
    %c0_8 = arith.constant 0 : index
    %12 = vector.load %arg1[%c0_7, %c0_8] : memref<32x128xf32, #tpu.memory_space<vmem>>, vector<32x128xf32>
    %cst_9 = arith.constant dense<0.000000e+00> : vector<8x128xf32>
    %13 = tpu.matmul %11, %12, %cst_9 {dimension_numbers = #tpu.dot_dimension_numbers<[1], [0], [0], [1], [0, 0, 1, 1], [], []>} : vector<8x32xf32>, vector<32x128xf32>, vector<8x128xf32> -> vector<8x128xf32>
    %14 = arith.addf %10, %13 : vector<8x128xf32>
    %15 = arith.negf %14 : vector<8x128xf32>
    %16 = math.exp %15 : vector<8x128xf32>
    %cst_10 = arith.constant 1.000000e+00 : f32
    %17 = vector.broadcast %cst_10 : f32 to vector<8x128xf32>
    %18 = arith.addf %17, %16 : vector<8x128xf32>
    %19 = arith.divf %17, %18 : vector<8x128xf32>
    %20 = math.tanh %14 : vector<8x128xf32>
    %21 = arith.select %6, %19, %20 : vector<8x128xi1>, vector<8x128xf32>
    %22 = vector.extract_strided_slice %21 {offsets = [0, 0], sizes = [8, 32], strides = [1, 1]} : vector<8x128xf32> to vector<8x32xf32>
    %23 = vector.extract_strided_slice %21 {offsets = [0, 32], sizes = [8, 32], strides = [1, 1]} : vector<8x128xf32> to vector<8x32xf32>
    %24 = vector.extract_strided_slice %21 {offsets = [0, 64], sizes = [8, 32], strides = [1, 1]} : vector<8x128xf32> to vector<8x32xf32>
    %25 = vector.extract_strided_slice %21 {offsets = [0, 96], sizes = [8, 32], strides = [1, 1]} : vector<8x128xf32> to vector<8x32xf32>
    %c0_11 = arith.constant 0 : index
    %c0_12 = arith.constant 0 : index
    %26 = vector.load %arg7[%c0_11, %c0_12] : memref<8x32xf32, #tpu.memory_space<vmem>>, vector<8x32xf32>
    %27 = arith.mulf %23, %26 : vector<8x32xf32>
    %28 = arith.mulf %22, %25 : vector<8x32xf32>
    %29 = arith.addf %27, %28 : vector<8x32xf32>
    %30 = math.tanh %29 : vector<8x32xf32>
    %31 = arith.mulf %24, %30 : vector<8x32xf32>
    %c0_13 = arith.constant 0 : index
    %c0_14 = arith.constant 0 : index
    %32 = vector.load %arg7[%c0_13, %c0_14] : memref<8x32xf32, #tpu.memory_space<vmem>>, vector<8x32xf32>
    tpu.vector_store %arg7[%c0_13, %c0_14], %29 {strides = array<i32>} : memref<8x32xf32, #tpu.memory_space<vmem>>, vector<8x32xf32>,
    %c0_15 = arith.constant 0 : index
    %c0_16 = arith.constant 0 : index
    %33 = vector.load %arg6[%c0_15, %c0_16] : memref<8x32xf32, #tpu.memory_space<vmem>>, vector<8x32xf32>
    tpu.vector_store %arg6[%c0_15, %c0_16], %31 {strides = array<i32>} : memref<8x32xf32, #tpu.memory_space<vmem>>, vector<8x32xf32>,
    %34 = arith.index_cast %8 : i32 to index
    %c0_17 = arith.constant 0 : index
    %35 = vector.load %arg5[%34, %c0_17] : memref<64x32xf32, #tpu.memory_space<vmem>>, vector<8x32xf32>
    tpu.vector_store %arg5[%34, %c0_17], %31 {strides = array<i32>} : memref<64x32xf32, #tpu.memory_space<vmem>>, vector<8x32xf32>,
    %c1_i32 = arith.constant 1 : i32
    %c8_i32_18 = arith.constant 8 : i32
    %36 = arith.muli %c1_i32, %c8_i32_18 : i32
    %37 = tpu.assume_multiple %36, 8 : i32
    %38 = arith.index_cast %37 : i32 to index
    %c0_19 = arith.constant 0 : index
    %39 = vector.load %arg0[%38, %c0_19] : memref<64x128xf32, #tpu.memory_space<vmem>>, vector<8x128xf32>
    %c0_20 = arith.constant 0 : index
    %c0_21 = arith.constant 0 : index
    %40 = vector.load %arg6[%c0_20, %c0_21] : memref<8x32xf32, #tpu.memory_space<vmem>>, vector<8x32xf32>
    %c0_22 = arith.constant 0 : index
    %c0_23 = arith.constant 0 : index
    %41 = vector.load %arg1[%c0_22, %c0_23] : memref<32x128xf32, #tpu.memory_space<vmem>>, vector<32x128xf32>
    %cst_24 = arith.constant dense<0.000000e+00> : vector<8x128xf32>
    %42 = tpu.matmul %40, %41, %cst_24 {dimension_numbers = #tpu.dot_dimension_numbers<[1], [0], [0], [1], [0, 0, 1, 1], [], []>} : vector<8x32xf32>, vector<32x128xf32>, vector<8x128xf32> -> vector<8x128xf32>
    %43 = arith.addf %39, %42 : vector<8x128xf32>
    %44 = arith.negf %43 : vector<8x128xf32>
    %45 = math.exp %44 : vector<8x128xf32>
    %cst_25 = arith.constant 1.000000e+00 : f32
    %46 = vector.broadcast %cst_25 : f32 to vector<8x128xf32>
    %47 = arith.addf %46, %45 : vector<8x128xf32>
    %48 = arith.divf %46, %47 : vector<8x128xf32>
    %49 = math.tanh %43 : vector<8x128xf32>
    %50 = arith.select %6, %48, %49 : vector<8x128xi1>, vector<8x128xf32>
    %51 = vector.extract_strided_slice %50 {offsets = [0, 0], sizes = [8, 32], strides = [1, 1]} : vector<8x128xf32> to vector<8x32xf32>
    %52 = vector.extract_strided_slice %50 {offsets = [0, 32], sizes = [8, 32], strides = [1, 1]} : vector<8x128xf32> to vector<8x32xf32>
    %53 = vector.extract_strided_slice %50 {offsets = [0, 64], sizes = [8, 32], strides = [1, 1]} : vector<8x128xf32> to vector<8x32xf32>
    %54 = vector.extract_strided_slice %50 {offsets = [0, 96], sizes = [8, 32], strides = [1, 1]} : vector<8x128xf32> to vector<8x32xf32>
    %c0_26 = arith.constant 0 : index
    %c0_27 = arith.constant 0 : index
    %55 = vector.load %arg7[%c0_26, %c0_27] : memref<8x32xf32, #tpu.memory_space<vmem>>, vector<8x32xf32>
    %56 = arith.mulf %52, %55 : vector<8x32xf32>
    %57 = arith.mulf %51, %54 : vector<8x32xf32>
    %58 = arith.addf %56, %57 : vector<8x32xf32>
    %59 = math.tanh %58 : vector<8x32xf32>
    %60 = arith.mulf %53, %59 : vector<8x32xf32>
    %c0_28 = arith.constant 0 : index
    %c0_29 = arith.constant 0 : index
    %61 = vector.load %arg7[%c0_28, %c0_29] : memref<8x32xf32, #tpu.memory_space<vmem>>, vector<8x32xf32>
    tpu.vector_store %arg7[%c0_28, %c0_29], %58 {strides = array<i32>} : memref<8x32xf32, #tpu.memory_space<vmem>>, vector<8x32xf32>,
    %c0_30 = arith.constant 0 : index
    %c0_31 = arith.constant 0 : index
    %62 = vector.load %arg6[%c0_30, %c0_31] : memref<8x32xf32, #tpu.memory_space<vmem>>, vector<8x32xf32>
    tpu.vector_store %arg6[%c0_30, %c0_31], %60 {strides = array<i32>} : memref<8x32xf32, #tpu.memory_space<vmem>>, vector<8x32xf32>,
    %63 = arith.index_cast %37 : i32 to index
    %c0_32 = arith.constant 0 : index
    %64 = vector.load %arg5[%63, %c0_32] : memref<64x32xf32, #tpu.memory_space<vmem>>, vector<8x32xf32>
    tpu.vector_store %arg5[%63, %c0_32], %60 {strides = array<i32>} : memref<64x32xf32, #tpu.memory_space<vmem>>, vector<8x32xf32>,
    %c2_i32 = arith.constant 2 : i32
    %c8_i32_33 = arith.constant 8 : i32
    %65 = arith.muli %c2_i32, %c8_i32_33 : i32
    %66 = tpu.assume_multiple %65, 8 : i32
    %67 = arith.index_cast %66 : i32 to index
    %c0_34 = arith.constant 0 : index
    %68 = vector.load %arg0[%67, %c0_34] : memref<64x128xf32, #tpu.memory_space<vmem>>, vector<8x128xf32>
    %c0_35 = arith.constant 0 : index
    %c0_36 = arith.constant 0 : index
    %69 = vector.load %arg6[%c0_35, %c0_36] : memref<8x32xf32, #tpu.memory_space<vmem>>, vector<8x32xf32>
    %c0_37 = arith.constant 0 : index
    %c0_38 = arith.constant 0 : index
    %70 = vector.load %arg1[%c0_37, %c0_38] : memref<32x128xf32, #tpu.memory_space<vmem>>, vector<32x128xf32>
    %cst_39 = arith.constant dense<0.000000e+00> : vector<8x128xf32>
    %71 = tpu.matmul %69, %70, %cst_39 {dimension_numbers = #tpu.dot_dimension_numbers<[1], [0], [0], [1], [0, 0, 1, 1], [], []>} : vector<8x32xf32>, vector<32x128xf32>, vector<8x128xf32> -> vector<8x128xf32>
    %72 = arith.addf %68, %71 : vector<8x128xf32>
    %73 = arith.negf %72 : vector<8x128xf32>
    %74 = math.exp %73 : vector<8x128xf32>
    %cst_40 = arith.constant 1.000000e+00 : f32
    %75 = vector.broadcast %cst_40 : f32 to vector<8x128xf32>
    %76 = arith.addf %75, %74 : vector<8x128xf32>
    %77 = arith.divf %75, %76 : vector<8x128xf32>
    %78 = math.tanh %72 : vector<8x128xf32>
    %79 = arith.select %6, %77, %78 : vector<8x128xi1>, vector<8x128xf32>
    %80 = vector.extract_strided_slice %79 {offsets = [0, 0], sizes = [8, 32], strides = [1, 1]} : vector<8x128xf32> to vector<8x32xf32>
    %81 = vector.extract_strided_slice %79 {offsets = [0, 32], sizes = [8, 32], strides = [1, 1]} : vector<8x128xf32> to vector<8x32xf32>
    %82 = vector.extract_strided_slice %79 {offsets = [0, 64], sizes = [8, 32], strides = [1, 1]} : vector<8x128xf32> to vector<8x32xf32>
    %83 = vector.extract_strided_slice %79 {offsets = [0, 96], sizes = [8, 32], strides = [1, 1]} : vector<8x128xf32> to vector<8x32xf32>
    %c0_41 = arith.constant 0 : index
    %c0_42 = arith.constant 0 : index
    %84 = vector.load %arg7[%c0_41, %c0_42] : memref<8x32xf32, #tpu.memory_space<vmem>>, vector<8x32xf32>
    %85 = arith.mulf %81, %84 : vector<8x32xf32>
    %86 = arith.mulf %80, %83 : vector<8x32xf32>
    %87 = arith.addf %85, %86 : vector<8x32xf32>
    %88 = math.tanh %87 : vector<8x32xf32>
    %89 = arith.mulf %82, %88 : vector<8x32xf32>
    %c0_43 = arith.constant 0 : index
    %c0_44 = arith.constant 0 : index
    %90 = vector.load %arg7[%c0_43, %c0_44] : memref<8x32xf32, #tpu.memory_space<vmem>>, vector<8x32xf32>
    tpu.vector_store %arg7[%c0_43, %c0_44], %87 {strides = array<i32>} : memref<8x32xf32, #tpu.memory_space<vmem>>, vector<8x32xf32>,
    %c0_45 = arith.constant 0 : index
    %c0_46 = arith.constant 0 : index
    %91 = vector.load %arg6[%c0_45, %c0_46] : memref<8x32xf32, #tpu.memory_space<vmem>>, vector<8x32xf32>
    tpu.vector_store %arg6[%c0_45, %c0_46], %89 {strides = array<i32>} : memref<8x32xf32, #tpu.memory_space<vmem>>, vector<8x32xf32>,
    %92 = arith.index_cast %66 : i32 to index
    %c0_47 = arith.constant 0 : index
    %93 = vector.load %arg5[%92, %c0_47] : memref<64x32xf32, #tpu.memory_space<vmem>>, vector<8x32xf32>
    tpu.vector_store %arg5[%92, %c0_47], %89 {strides = array<i32>} : memref<64x32xf32, #tpu.memory_space<vmem>>, vector<8x32xf32>,
    %c3_i32 = arith.constant 3 : i32
    %c8_i32_48 = arith.constant 8 : i32
    %94 = arith.muli %c3_i32, %c8_i32_48 : i32
    %95 = tpu.assume_multiple %94, 8 : i32
    %96 = arith.index_cast %95 : i32 to index
    %c0_49 = arith.constant 0 : index
    %97 = vector.load %arg0[%96, %c0_49] : memref<64x128xf32, #tpu.memory_space<vmem>>, vector<8x128xf32>
    %c0_50 = arith.constant 0 : index
    %c0_51 = arith.constant 0 : index
    %98 = vector.load %arg6[%c0_50, %c0_51] : memref<8x32xf32, #tpu.memory_space<vmem>>, vector<8x32xf32>
    %c0_52 = arith.constant 0 : index
    %c0_53 = arith.constant 0 : index
    %99 = vector.load %arg1[%c0_52, %c0_53] : memref<32x128xf32, #tpu.memory_space<vmem>>, vector<32x128xf32>
    %cst_54 = arith.constant dense<0.000000e+00> : vector<8x128xf32>
    %100 = tpu.matmul %98, %99, %cst_54 {dimension_numbers = #tpu.dot_dimension_numbers<[1], [0], [0], [1], [0, 0, 1, 1], [], []>} : vector<8x32xf32>, vector<32x128xf32>, vector<8x128xf32> -> vector<8x128xf32>
    %101 = arith.addf %97, %100 : vector<8x128xf32>
    %102 = arith.negf %101 : vector<8x128xf32>
    %103 = math.exp %102 : vector<8x128xf32>
    %cst_55 = arith.constant 1.000000e+00 : f32
    %104 = vector.broadcast %cst_55 : f32 to vector<8x128xf32>
    %105 = arith.addf %104, %103 : vector<8x128xf32>
    %106 = arith.divf %104, %105 : vector<8x128xf32>
    %107 = math.tanh %101 : vector<8x128xf32>
    %108 = arith.select %6, %106, %107 : vector<8x128xi1>, vector<8x128xf32>
    %109 = vector.extract_strided_slice %108 {offsets = [0, 0], sizes = [8, 32], strides = [1, 1]} : vector<8x128xf32> to vector<8x32xf32>
    %110 = vector.extract_strided_slice %108 {offsets = [0, 32], sizes = [8, 32], strides = [1, 1]} : vector<8x128xf32> to vector<8x32xf32>
    %111 = vector.extract_strided_slice %108 {offsets = [0, 64], sizes = [8, 32], strides = [1, 1]} : vector<8x128xf32> to vector<8x32xf32>
    %112 = vector.extract_strided_slice %108 {offsets = [0, 96], sizes = [8, 32], strides = [1, 1]} : vector<8x128xf32> to vector<8x32xf32>
    %c0_56 = arith.constant 0 : index
    %c0_57 = arith.constant 0 : index
    %113 = vector.load %arg7[%c0_56, %c0_57] : memref<8x32xf32, #tpu.memory_space<vmem>>, vector<8x32xf32>
    %114 = arith.mulf %110, %113 : vector<8x32xf32>
    %115 = arith.mulf %109, %112 : vector<8x32xf32>
    %116 = arith.addf %114, %115 : vector<8x32xf32>
    %117 = math.tanh %116 : vector<8x32xf32>
    %118 = arith.mulf %111, %117 : vector<8x32xf32>
    %c0_58 = arith.constant 0 : index
    %c0_59 = arith.constant 0 : index
    %119 = vector.load %arg7[%c0_58, %c0_59] : memref<8x32xf32, #tpu.memory_space<vmem>>, vector<8x32xf32>
    tpu.vector_store %arg7[%c0_58, %c0_59], %116 {strides = array<i32>} : memref<8x32xf32, #tpu.memory_space<vmem>>, vector<8x32xf32>,
    %c0_60 = arith.constant 0 : index
    %c0_61 = arith.constant 0 : index
    %120 = vector.load %arg6[%c0_60, %c0_61] : memref<8x32xf32, #tpu.memory_space<vmem>>, vector<8x32xf32>
    tpu.vector_store %arg6[%c0_60, %c0_61], %118 {strides = array<i32>} : memref<8x32xf32, #tpu.memory_space<vmem>>, vector<8x32xf32>,
    %121 = arith.index_cast %95 : i32 to index
    %c0_62 = arith.constant 0 : index
    %122 = vector.load %arg5[%121, %c0_62] : memref<64x32xf32, #tpu.memory_space<vmem>>, vector<8x32xf32>
    tpu.vector_store %arg5[%121, %c0_62], %118 {strides = array<i32>} : memref<64x32xf32, #tpu.memory_space<vmem>>, vector<8x32xf32>,
    %c4_i32 = arith.constant 4 : i32
    %c8_i32_63 = arith.constant 8 : i32
    %123 = arith.muli %c4_i32, %c8_i32_63 : i32
    %124 = tpu.assume_multiple %123, 8 : i32
    %125 = arith.index_cast %124 : i32 to index
    %c0_64 = arith.constant 0 : index
    %126 = vector.load %arg0[%125, %c0_64] : memref<64x128xf32, #tpu.memory_space<vmem>>, vector<8x128xf32>
    %c0_65 = arith.constant 0 : index
    %c0_66 = arith.constant 0 : index
    %127 = vector.load %arg6[%c0_65, %c0_66] : memref<8x32xf32, #tpu.memory_space<vmem>>, vector<8x32xf32>
    %c0_67 = arith.constant 0 : index
    %c0_68 = arith.constant 0 : index
    %128 = vector.load %arg1[%c0_67, %c0_68] : memref<32x128xf32, #tpu.memory_space<vmem>>, vector<32x128xf32>
    %cst_69 = arith.constant dense<0.000000e+00> : vector<8x128xf32>
    %129 = tpu.matmul %127, %128, %cst_69 {dimension_numbers = #tpu.dot_dimension_numbers<[1], [0], [0], [1], [0, 0, 1, 1], [], []>} : vector<8x32xf32>, vector<32x128xf32>, vector<8x128xf32> -> vector<8x128xf32>
    %130 = arith.addf %126, %129 : vector<8x128xf32>
    %131 = arith.negf %130 : vector<8x128xf32>
    %132 = math.exp %131 : vector<8x128xf32>
    %cst_70 = arith.constant 1.000000e+00 : f32
    %133 = vector.broadcast %cst_70 : f32 to vector<8x128xf32>
    %134 = arith.addf %133, %132 : vector<8x128xf32>
    %135 = arith.divf %133, %134 : vector<8x128xf32>
    %136 = math.tanh %130 : vector<8x128xf32>
    %137 = arith.select %6, %135, %136 : vector<8x128xi1>, vector<8x128xf32>
    %138 = vector.extract_strided_slice %137 {offsets = [0, 0], sizes = [8, 32], strides = [1, 1]} : vector<8x128xf32> to vector<8x32xf32>
    %139 = vector.extract_strided_slice %137 {offsets = [0, 32], sizes = [8, 32], strides = [1, 1]} : vector<8x128xf32> to vector<8x32xf32>
    %140 = vector.extract_strided_slice %137 {offsets = [0, 64], sizes = [8, 32], strides = [1, 1]} : vector<8x128xf32> to vector<8x32xf32>
    %141 = vector.extract_strided_slice %137 {offsets = [0, 96], sizes = [8, 32], strides = [1, 1]} : vector<8x128xf32> to vector<8x32xf32>
    %c0_71 = arith.constant 0 : index
    %c0_72 = arith.constant 0 : index
    %142 = vector.load %arg7[%c0_71, %c0_72] : memref<8x32xf32, #tpu.memory_space<vmem>>, vector<8x32xf32>
    %143 = arith.mulf %139, %142 : vector<8x32xf32>
    %144 = arith.mulf %138, %141 : vector<8x32xf32>
    %145 = arith.addf %143, %144 : vector<8x32xf32>
    %146 = math.tanh %145 : vector<8x32xf32>
    %147 = arith.mulf %140, %146 : vector<8x32xf32>
    %c0_73 = arith.constant 0 : index
    %c0_74 = arith.constant 0 : index
    %148 = vector.load %arg7[%c0_73, %c0_74] : memref<8x32xf32, #tpu.memory_space<vmem>>, vector<8x32xf32>
    tpu.vector_store %arg7[%c0_73, %c0_74], %145 {strides = array<i32>} : memref<8x32xf32, #tpu.memory_space<vmem>>, vector<8x32xf32>,
    %c0_75 = arith.constant 0 : index
    %c0_76 = arith.constant 0 : index
    %149 = vector.load %arg6[%c0_75, %c0_76] : memref<8x32xf32, #tpu.memory_space<vmem>>, vector<8x32xf32>
    tpu.vector_store %arg6[%c0_75, %c0_76], %147 {strides = array<i32>} : memref<8x32xf32, #tpu.memory_space<vmem>>, vector<8x32xf32>,
    %150 = arith.index_cast %124 : i32 to index
    %c0_77 = arith.constant 0 : index
    %151 = vector.load %arg5[%150, %c0_77] : memref<64x32xf32, #tpu.memory_space<vmem>>, vector<8x32xf32>
    tpu.vector_store %arg5[%150, %c0_77], %147 {strides = array<i32>} : memref<64x32xf32, #tpu.memory_space<vmem>>, vector<8x32xf32>,
    %c5_i32 = arith.constant 5 : i32
    %c8_i32_78 = arith.constant 8 : i32
    %152 = arith.muli %c5_i32, %c8_i32_78 : i32
    %153 = tpu.assume_multiple %152, 8 : i32
    %154 = arith.index_cast %153 : i32 to index
    %c0_79 = arith.constant 0 : index
    %155 = vector.load %arg0[%154, %c0_79] : memref<64x128xf32, #tpu.memory_space<vmem>>, vector<8x128xf32>
    %c0_80 = arith.constant 0 : index
    %c0_81 = arith.constant 0 : index
    %156 = vector.load %arg6[%c0_80, %c0_81] : memref<8x32xf32, #tpu.memory_space<vmem>>, vector<8x32xf32>
    %c0_82 = arith.constant 0 : index
    %c0_83 = arith.constant 0 : index
    %157 = vector.load %arg1[%c0_82, %c0_83] : memref<32x128xf32, #tpu.memory_space<vmem>>, vector<32x128xf32>
    %cst_84 = arith.constant dense<0.000000e+00> : vector<8x128xf32>
    %158 = tpu.matmul %156, %157, %cst_84 {dimension_numbers = #tpu.dot_dimension_numbers<[1], [0], [0], [1], [0, 0, 1, 1], [], []>} : vector<8x32xf32>, vector<32x128xf32>, vector<8x128xf32> -> vector<8x128xf32>
    %159 = arith.addf %155, %158 : vector<8x128xf32>
    %160 = arith.negf %159 : vector<8x128xf32>
    %161 = math.exp %160 : vector<8x128xf32>
    %cst_85 = arith.constant 1.000000e+00 : f32
    %162 = vector.broadcast %cst_85 : f32 to vector<8x128xf32>
    %163 = arith.addf %162, %161 : vector<8x128xf32>
    %164 = arith.divf %162, %163 : vector<8x128xf32>
    %165 = math.tanh %159 : vector<8x128xf32>
    %166 = arith.select %6, %164, %165 : vector<8x128xi1>, vector<8x128xf32>
    %167 = vector.extract_strided_slice %166 {offsets = [0, 0], sizes = [8, 32], strides = [1, 1]} : vector<8x128xf32> to vector<8x32xf32>
    %168 = vector.extract_strided_slice %166 {offsets = [0, 32], sizes = [8, 32], strides = [1, 1]} : vector<8x128xf32> to vector<8x32xf32>
    %169 = vector.extract_strided_slice %166 {offsets = [0, 64], sizes = [8, 32], strides = [1, 1]} : vector<8x128xf32> to vector<8x32xf32>
    %170 = vector.extract_strided_slice %166 {offsets = [0, 96], sizes = [8, 32], strides = [1, 1]} : vector<8x128xf32> to vector<8x32xf32>
    %c0_86 = arith.constant 0 : index
    %c0_87 = arith.constant 0 : index
    %171 = vector.load %arg7[%c0_86, %c0_87] : memref<8x32xf32, #tpu.memory_space<vmem>>, vector<8x32xf32>
    %172 = arith.mulf %168, %171 : vector<8x32xf32>
    %173 = arith.mulf %167, %170 : vector<8x32xf32>
    %174 = arith.addf %172, %173 : vector<8x32xf32>
    %175 = math.tanh %174 : vector<8x32xf32>
    %176 = arith.mulf %169, %175 : vector<8x32xf32>
    %c0_88 = arith.constant 0 : index
    %c0_89 = arith.constant 0 : index
    %177 = vector.load %arg7[%c0_88, %c0_89] : memref<8x32xf32, #tpu.memory_space<vmem>>, vector<8x32xf32>
    tpu.vector_store %arg7[%c0_88, %c0_89], %174 {strides = array<i32>} : memref<8x32xf32, #tpu.memory_space<vmem>>, vector<8x32xf32>,
    %c0_90 = arith.constant 0 : index
    %c0_91 = arith.constant 0 : index
    %178 = vector.load %arg6[%c0_90, %c0_91] : memref<8x32xf32, #tpu.memory_space<vmem>>, vector<8x32xf32>
    tpu.vector_store %arg6[%c0_90, %c0_91], %176 {strides = array<i32>} : memref<8x32xf32, #tpu.memory_space<vmem>>, vector<8x32xf32>,
    %179 = arith.index_cast %153 : i32 to index
    %c0_92 = arith.constant 0 : index
    %180 = vector.load %arg5[%179, %c0_92] : memref<64x32xf32, #tpu.memory_space<vmem>>, vector<8x32xf32>
    tpu.vector_store %arg5[%179, %c0_92], %176 {strides = array<i32>} : memref<64x32xf32, #tpu.memory_space<vmem>>, vector<8x32xf32>,
    %c6_i32 = arith.constant 6 : i32
    %c8_i32_93 = arith.constant 8 : i32
    %181 = arith.muli %c6_i32, %c8_i32_93 : i32
    %182 = tpu.assume_multiple %181, 8 : i32
    %183 = arith.index_cast %182 : i32 to index
    %c0_94 = arith.constant 0 : index
    %184 = vector.load %arg0[%183, %c0_94] : memref<64x128xf32, #tpu.memory_space<vmem>>, vector<8x128xf32>
    %c0_95 = arith.constant 0 : index
    %c0_96 = arith.constant 0 : index
    %185 = vector.load %arg6[%c0_95, %c0_96] : memref<8x32xf32, #tpu.memory_space<vmem>>, vector<8x32xf32>
    %c0_97 = arith.constant 0 : index
    %c0_98 = arith.constant 0 : index
    %186 = vector.load %arg1[%c0_97, %c0_98] : memref<32x128xf32, #tpu.memory_space<vmem>>, vector<32x128xf32>
    %cst_99 = arith.constant dense<0.000000e+00> : vector<8x128xf32>
    %187 = tpu.matmul %185, %186, %cst_99 {dimension_numbers = #tpu.dot_dimension_numbers<[1], [0], [0], [1], [0, 0, 1, 1], [], []>} : vector<8x32xf32>, vector<32x128xf32>, vector<8x128xf32> -> vector<8x128xf32>
    %188 = arith.addf %184, %187 : vector<8x128xf32>
    %189 = arith.negf %188 : vector<8x128xf32>
    %190 = math.exp %189 : vector<8x128xf32>
    %cst_100 = arith.constant 1.000000e+00 : f32
    %191 = vector.broadcast %cst_100 : f32 to vector<8x128xf32>
    %192 = arith.addf %191, %190 : vector<8x128xf32>
    %193 = arith.divf %191, %192 : vector<8x128xf32>
    %194 = math.tanh %188 : vector<8x128xf32>
    %195 = arith.select %6, %193, %194 : vector<8x128xi1>, vector<8x128xf32>
    %196 = vector.extract_strided_slice %195 {offsets = [0, 0], sizes = [8, 32], strides = [1, 1]} : vector<8x128xf32> to vector<8x32xf32>
    %197 = vector.extract_strided_slice %195 {offsets = [0, 32], sizes = [8, 32], strides = [1, 1]} : vector<8x128xf32> to vector<8x32xf32>
    %198 = vector.extract_strided_slice %195 {offsets = [0, 64], sizes = [8, 32], strides = [1, 1]} : vector<8x128xf32> to vector<8x32xf32>
    %199 = vector.extract_strided_slice %195 {offsets = [0, 96], sizes = [8, 32], strides = [1, 1]} : vector<8x128xf32> to vector<8x32xf32>
    %c0_101 = arith.constant 0 : index
    %c0_102 = arith.constant 0 : index
    %200 = vector.load %arg7[%c0_101, %c0_102] : memref<8x32xf32, #tpu.memory_space<vmem>>, vector<8x32xf32>
    %201 = arith.mulf %197, %200 : vector<8x32xf32>
    %202 = arith.mulf %196, %199 : vector<8x32xf32>
    %203 = arith.addf %201, %202 : vector<8x32xf32>
    %204 = math.tanh %203 : vector<8x32xf32>
    %205 = arith.mulf %198, %204 : vector<8x32xf32>
    %c0_103 = arith.constant 0 : index
    %c0_104 = arith.constant 0 : index
    %206 = vector.load %arg7[%c0_103, %c0_104] : memref<8x32xf32, #tpu.memory_space<vmem>>, vector<8x32xf32>
    tpu.vector_store %arg7[%c0_103, %c0_104], %203 {strides = array<i32>} : memref<8x32xf32, #tpu.memory_space<vmem>>, vector<8x32xf32>,
    %c0_105 = arith.constant 0 : index
    %c0_106 = arith.constant 0 : index
    %207 = vector.load %arg6[%c0_105, %c0_106] : memref<8x32xf32, #tpu.memory_space<vmem>>, vector<8x32xf32>
    tpu.vector_store %arg6[%c0_105, %c0_106], %205 {strides = array<i32>} : memref<8x32xf32, #tpu.memory_space<vmem>>, vector<8x32xf32>,
    %208 = arith.index_cast %182 : i32 to index
    %c0_107 = arith.constant 0 : index
    %209 = vector.load %arg5[%208, %c0_107] : memref<64x32xf32, #tpu.memory_space<vmem>>, vector<8x32xf32>
    tpu.vector_store %arg5[%208, %c0_107], %205 {strides = array<i32>} : memref<64x32xf32, #tpu.memory_space<vmem>>, vector<8x32xf32>,
    %c7_i32 = arith.constant 7 : i32
    %c8_i32_108 = arith.constant 8 : i32
    %210 = arith.muli %c7_i32, %c8_i32_108 : i32
    %211 = tpu.assume_multiple %210, 8 : i32
    %212 = arith.index_cast %211 : i32 to index
    %c0_109 = arith.constant 0 : index
    %213 = vector.load %arg0[%212, %c0_109] : memref<64x128xf32, #tpu.memory_space<vmem>>, vector<8x128xf32>
    %c0_110 = arith.constant 0 : index
    %c0_111 = arith.constant 0 : index
    %214 = vector.load %arg6[%c0_110, %c0_111] : memref<8x32xf32, #tpu.memory_space<vmem>>, vector<8x32xf32>
    %c0_112 = arith.constant 0 : index
    %c0_113 = arith.constant 0 : index
    %215 = vector.load %arg1[%c0_112, %c0_113] : memref<32x128xf32, #tpu.memory_space<vmem>>, vector<32x128xf32>
    %cst_114 = arith.constant dense<0.000000e+00> : vector<8x128xf32>
    %216 = tpu.matmul %214, %215, %cst_114 {dimension_numbers = #tpu.dot_dimension_numbers<[1], [0], [0], [1], [0, 0, 1, 1], [], []>} : vector<8x32xf32>, vector<32x128xf32>, vector<8x128xf32> -> vector<8x128xf32>
    %217 = arith.addf %213, %216 : vector<8x128xf32>
    %218 = arith.negf %217 : vector<8x128xf32>
    %219 = math.exp %218 : vector<8x128xf32>
    %cst_115 = arith.constant 1.000000e+00 : f32
    %220 = vector.broadcast %cst_115 : f32 to vector<8x128xf32>
    %221 = arith.addf %220, %219 : vector<8x128xf32>
    %222 = arith.divf %220, %221 : vector<8x128xf32>
    %223 = math.tanh %217 : vector<8x128xf32>
    %224 = arith.select %6, %222, %223 : vector<8x128xi1>, vector<8x128xf32>
    %225 = vector.extract_strided_slice %224 {offsets = [0, 0], sizes = [8, 32], strides = [1, 1]} : vector<8x128xf32> to vector<8x32xf32>
    %226 = vector.extract_strided_slice %224 {offsets = [0, 32], sizes = [8, 32], strides = [1, 1]} : vector<8x128xf32> to vector<8x32xf32>
    %227 = vector.extract_strided_slice %224 {offsets = [0, 64], sizes = [8, 32], strides = [1, 1]} : vector<8x128xf32> to vector<8x32xf32>
    %228 = vector.extract_strided_slice %224 {offsets = [0, 96], sizes = [8, 32], strides = [1, 1]} : vector<8x128xf32> to vector<8x32xf32>
    %c0_116 = arith.constant 0 : index
    %c0_117 = arith.constant 0 : index
    %229 = vector.load %arg7[%c0_116, %c0_117] : memref<8x32xf32, #tpu.memory_space<vmem>>, vector<8x32xf32>
    %230 = arith.mulf %226, %229 : vector<8x32xf32>
    %231 = arith.mulf %225, %228 : vector<8x32xf32>
    %232 = arith.addf %230, %231 : vector<8x32xf32>
    %233 = math.tanh %232 : vector<8x32xf32>
    %234 = arith.mulf %227, %233 : vector<8x32xf32>
    %c0_118 = arith.constant 0 : index
    %c0_119 = arith.constant 0 : index
    %235 = vector.load %arg7[%c0_118, %c0_119] : memref<8x32xf32, #tpu.memory_space<vmem>>, vector<8x32xf32>
    tpu.vector_store %arg7[%c0_118, %c0_119], %232 {strides = array<i32>} : memref<8x32xf32, #tpu.memory_space<vmem>>, vector<8x32xf32>,
    %c0_120 = arith.constant 0 : index
    %c0_121 = arith.constant 0 : index
    %236 = vector.load %arg6[%c0_120, %c0_121] : memref<8x32xf32, #tpu.memory_space<vmem>>, vector<8x32xf32>
    tpu.vector_store %arg6[%c0_120, %c0_121], %234 {strides = array<i32>} : memref<8x32xf32, #tpu.memory_space<vmem>>, vector<8x32xf32>,
    %237 = arith.index_cast %211 : i32 to index
    %c0_122 = arith.constant 0 : index
    %238 = vector.load %arg5[%237, %c0_122] : memref<64x32xf32, #tpu.memory_space<vmem>>, vector<8x32xf32>
    tpu.vector_store %arg5[%237, %c0_122], %234 {strides = array<i32>} : memref<64x32xf32, #tpu.memory_space<vmem>>, vector<8x32xf32>,
    %c8_i32_123 = arith.constant 8 : i32
    %c0_124 = arith.constant 0 : index
    %c0_125 = arith.constant 0 : index
    %239 = vector.load %arg5[%c0_124, %c0_125] : memref<64x32xf32, #tpu.memory_space<vmem>>, vector<64x32xf32>
    %c0_126 = arith.constant 0 : index
    %c0_127 = arith.constant 0 : index
    %240 = vector.load %arg2[%c0_126, %c0_127] : memref<32x128xf32, #tpu.memory_space<vmem>>, vector<32x128xf32>
    %cst_128 = arith.constant dense<0.000000e+00> : vector<64x128xf32>
    %241 = tpu.matmul %239, %240, %cst_128 {dimension_numbers = #tpu.dot_dimension_numbers<[1], [0], [0], [1], [0, 0, 1, 1], [], []>} : vector<64x32xf32>, vector<32x128xf32>, vector<64x128xf32> -> vector<64x128xf32>
    %c0_129 = arith.constant 0 : index
    %c0_130 = arith.constant 0 : index
    %242 = vector.load %arg3[%c0_129, %c0_130] : memref<1x128xf32, #tpu.memory_space<vmem>>, vector<1x128xf32>
    %243 = vector.broadcast %242 : vector<1x128xf32> to vector<64x128xf32>
    %244 = arith.addf %241, %243 : vector<64x128xf32>
    %cst_131 = arith.constant dense<0xFF800000> : vector<64xf32>
    %245 = vector.multi_reduction <maximumf>, %244, %cst_131 [1] : vector<64x128xf32> to vector<64xf32>
    %246 = vector.shape_cast %245 : vector<64xf32> to vector<64x1xf32>
    %247 = vector.broadcast %246 : vector<64x1xf32> to vector<64x128xf32>
    %248 = arith.subf %244, %247 : vector<64x128xf32>
    %249 = math.exp %248 : vector<64x128xf32>
    %cst_132 = arith.constant dense<0.000000e+00> : vector<64xf32>
    %250 = vector.multi_reduction <add>, %249, %cst_132 [1] : vector<64x128xf32> to vector<64xf32>
    %251 = vector.shape_cast %250 : vector<64xf32> to vector<64x1xf32>
    %252 = math.log %251 : vector<64x1xf32>
    %253 = vector.broadcast %252 : vector<64x1xf32> to vector<64x128xf32>
    %254 = arith.subf %248, %253 : vector<64x128xf32>
    %c0_133 = arith.constant 0 : index
    %c0_134 = arith.constant 0 : index
    %255 = vector.load %arg4[%c0_133, %c0_134] : memref<64x128xf32, #tpu.memory_space<vmem>>, vector<64x128xf32>
    tpu.vector_store %arg4[%c0_133, %c0_134], %254 {strides = array<i32>} : memref<64x128xf32, #tpu.memory_space<vmem>>, vector<64x128xf32>,
    return
  }
}

</mosaic_0001>

<llo_original>
// kernel: lstm_lm_forward.1
$region0: #{lstm_lm_forward.1}
  #allocation0 [shape = 'u32[]', space=smem, size = 0x4, offset = 0x4, fixed_abs, tag = 'smem constant byte address 0x4 - core index']
  #allocation1 [shape = 'u32[144,128]{1,0:T(1,128)}', space=vmem, size = 0x12000, scoped, tag = 'internal scratch']
  #allocation2 [shape = 'f32[64,32]{1,0:T(8,128)}', space=vmem, size = 0x8000, scoped, tag = 'scratch operand']
  #allocation3 [shape = 'f32[8,32]{1,0:T(8,128)}', space=vmem, size = 0x1000, scoped, tag = 'scratch operand']
  #allocation4 [shape = 'f32[8,32]{1,0:T(8,128)}', space=vmem, size = 0x1000, scoped, tag = 'scratch operand']
  %s0 = inlined_call_operand.vmem [shape: f32[64,128], index: 0, kind: input, shape index: {}]
  %s1 = inlined_call_operand.vmem [shape: f32[32,128], index: 1, kind: input, shape index: {}]
  %s2 = inlined_call_operand.vmem [shape: f32[32,128], index: 2, kind: input, shape index: {}]
  %s3 = inlined_call_operand.vmem [shape: f32[1,128], index: 3, kind: input, shape index: {}]
  %s4 = inlined_call_operand.vmem [shape: f32[64,128], index: 4, kind: output, shape index: {}]
  %s5 = sld [smem:[#allocation0]]
  $region26: #{lstm_lm_forward.1} parent=0
    _
  %s7 = ssub.s32 1, %s5
  %s8 = scalar_select 0, %s7, %s5
  // Predicated region
  $region2: #{lstm_lm_forward.1} parent=0 // pred_check
    _
  $region3: #{lstm_lm_forward.1} parent=0 // pred_check_branch
    %10 = sbr.rel (0) target = $region5
  $region4: #{lstm_lm_forward.1} parent=0 // pred_region
    _
  $region5: #{lstm_lm_forward.1} parent=0 // pred_fallthru
    _
  // Predicated region
  $region6: #{lstm_lm_forward.1} parent=0 // pred_check
    _
  $region7: #{lstm_lm_forward.1} parent=0 // pred_check_branch
    %12 = sbr.rel (0) target = $region9
  $region8: #{lstm_lm_forward.1} parent=0 // pred_region
    _
  $region9: #{lstm_lm_forward.1} parent=0 // pred_fallthru
    _
  // Predicated region
  $region10: #{lstm_lm_forward.1} parent=0 // pred_check
    _
  $region11: #{lstm_lm_forward.1} parent=0 // pred_check_branch
    %14 = sbr.rel (0) target = $region13
  $region12: #{lstm_lm_forward.1} parent=0 // pred_region
    _
  $region13: #{lstm_lm_forward.1} parent=0 // pred_fallthru
    _
  // Predicated region
  $region14: #{lstm_lm_forward.1} parent=0 // pred_check
    _
  $region15: #{lstm_lm_forward.1} parent=0 // pred_check_branch
    %16 = sbr.rel (0) target = $region17
  $region16: #{lstm_lm_forward.1} parent=0 // pred_region
    _
  $region17: #{lstm_lm_forward.1} parent=0 // pred_fallthru
    _
  %vm17 = vcmask 261120
  %18 = vst.msk [vmem:[#allocation3] sm:$0xff] %vm17, 0.0
  %19 = vst.msk [vmem:[#allocation4] sm:$0xff] %vm17, 0.0
  %v20 = vlaneseq
  %v21 = vand.u32 %v20, 127
  %vm22 = vcmp.lt.s32.totalorder %v21, 96
  %v23 = vld [vmem:[%s0] sm:$0xff]
  %v24 = vld [vmem:[#allocation3] sm:$0xff]
  %v25 = vld [vmem:[%s1] sm:$0xff]
  %v26 = vld [vmem:[%s1 + $0x8] sm:$0xff]
  %v27 = vld [vmem:[%s1 + $0x10] sm:$0xff]
  %v28 = vld [vmem:[%s1 + $0x18] sm:$0xff]
  %v30 = vsel %vm17, %v24, 0
  %32 = vmatprep.subr.mxu0 0.0
  %33 = vmatpush1.msra.mxu0 %v25
  %34 = vmatprep.subr.mxu0 0.0
  %35 = vmatpush1.msra.mxu0 %v26
  %36 = vmatprep.subr.mxu0 0.0
  %37 = vmatpush1.msra.mxu0 %v27
  %38 = vmatprep.subr.mxu0 0.0
  %39 = vmatpush1.msra.mxu0 %v28
  %40 = vmatprep.subr.mxu0 0.0
  %41 = vmatpush1.msra.mxu0 0.0
  %42 = vmatprep.subr.mxu0 0.0
  %43 = vmatpush1.msra.mxu0 0.0
  %44 = vmatprep.subr.mxu0 0.0
  %45 = vmatpush1.msra.mxu0 0.0
  %46 = vmatprep.subr.mxu0 0.0
  %47 = vmatpush1.msra.mxu0 0.0
  %48 = vmatprep.subr.mxu0 0.0
  %49 = vmatpush1.msra.mxu0 0.0
  %50 = vmatprep.subr.mxu0 0.0
  %51 = vmatpush1.msra.mxu0 0.0
  %52 = vmatprep.subr.mxu0 0.0
  %53 = vmatpush1.msra.mxu0 0.0
  %54 = vmatprep.subr.mxu0 0.0
  %55 = vmatpush1.msra.mxu0 0.0
  %56 = vmatprep.subr.mxu0 0.0
  %57 = vmatpush1.msra.mxu0 0.0
  %58 = vmatprep.subr.mxu0 0.0
  %59 = vmatpush1.msra.mxu0 0.0
  %60 = vmatprep.subr.mxu0 0.0
  %61 = vmatpush1.msra.mxu0 0.0
  %62 = vmatprep.subr.mxu0 0.0
  %63 = vmatpush1.msra.mxu0 0.0
  %64 = vmatprep.subr.mxu0 0.0
  %65 = vmatpush1.msra.mxu0 0.0
  %66 = vmatprep.subr.mxu0 0.0
  %67 = vmatpush1.msra.mxu0 0.0
  %68 = vmatprep.subr.mxu0 0.0
  %69 = vmatpush1.msra.mxu0 0.0
  %70 = vmatprep.subr.mxu0 0.0
  %71 = vmatpush1.msra.mxu0 0.0
  %72 = vmatprep.subr.mxu0 0.0
  %73 = vmatpush1.msra.mxu0 0.0
  %74 = vmatprep.subr.mxu0 0.0
  %75 = vmatpush1.msra.mxu0 0.0
  %76 = vmatprep.subr.mxu0 0.0
  %77 = vmatpush1.msra.mxu0 0.0
  %78 = vmatprep.subr.mxu0 0.0
  %79 = vmatpush1.msra.mxu0 0.0
  %80 = vmatprep.subr.mxu0 0.0
  %81 = vmatpush1.msra.mxu0 0.0
  %82 = vmatprep.subr.mxu0 0.0
  %83 = vmatpush1.msra.mxu0 0.0
  %84 = vmatprep.subr.mxu0 0.0
  %85 = vmatpush1.msra.mxu0 0.0
  %86 = vmatprep.subr.mxu0 0.0
  %87 = vmatpush1.msra.mxu0 0.0
  %88 = vmatprep.subr.mxu0 0.0
  %89 = vmatpush1.msra.mxu0 0.0
  %90 = vmatprep.subr.mxu0 0.0
  %91 = vmatpush1.msra.mxu0 0.0
  %92 = vmatprep.subr.mxu0 0.0
  %93 = vmatpush1.msra.mxu0 0.0
  %94 = vmatprep.subr.mxu0 0.0
  %95 = vmatpush1.msra.mxu0 0.0
  %96 = vmatprep.mubr.f32.mxu0 0.0
  %97 = vmatmul.mubr.f32.gmra.mrb[0].mxu0 %v30
  %v98 = vpop.f32.mrb[0].mxu0
  %v99 = vadd.f32 0.0, %v98
  %v100 = vpop.f32.mrb[0].mxu0
  %101 = vdwg.mxu0
  %v102 = vadd.f32 %v23, %v99
  %v103 = vxor.u32 %v102, 2147483648
  %v104 = vmul.f32 %v103, 1.442695
  %v105 = vpow.pop %v104
  %v106 = vadd.f32 %v105, 1.0
  %v107 = vrcp.pop %v106
  %v108 = vmul.f32 1.0, %v107
  %v109 = vtanh.pop %v102
  %v110 = vsel %vm22, %v108, %v109
  %v111 = vld [vmem:[#allocation4] sm:$0xff]
  %113 = vrot.lane.b32.xlu0 %v111, 32
  %v114 = vpop.permute.xlu0 %113
  %v116 = vmul.f32 %v110, %v114
  %118 = vrot.lane.b32.xlu0 %v110, 32
  %v119 = vpop.permute.xlu0 %118
  %v121 = vmul.f32 %v110, %v119
  %123 = vrot.lane.b32.xlu0 %v121, 32
  %v124 = vpop.permute.xlu0 %123
  %v126 = vadd.f32 %v116, %v124
  %v127 = vtanh.pop %v126
  %129 = vrot.lane.b32.xlu0 %v127, 32
  %v130 = vpop.permute.xlu0 %129
  %v132 = vmul.f32 %v110, %v130
  %134 = vrot.lane.b32.xlu0 %v126, 96
  %v135 = vpop.permute.xlu0 %134
  %137 = vst.msk [vmem:[#allocation4] sm:$0xff] %vm17, %v135
  %139 = vrot.lane.b32.xlu0 %v132, 64
  %v140 = vpop.permute.xlu0 %139
  %142 = vst.msk [vmem:[#allocation3] sm:$0xff] %vm17, %v140
  %143 = vst.msk [vmem:[#allocation2] sm:$0xff] %vm17, %v140
  %s144 = scalar_lea.vmem %s0, 8
  %v145 = vld [vmem:[%s144] sm:$0xff]
  %v146 = vld [vmem:[#allocation3] sm:$0xff]
  %v147 = vld [vmem:[%s1] sm:$0xff]
  %v148 = vld [vmem:[%s1 + $0x8] sm:$0xff]
  %v149 = vld [vmem:[%s1 + $0x10] sm:$0xff]
  %v150 = vld [vmem:[%s1 + $0x18] sm:$0xff]
  %v152 = vsel %vm17, %v146, 0
  %154 = vmatprep.subr.mxu0 0.0
  %155 = vmatpush1.msra.mxu0 %v147
  %156 = vmatprep.subr.mxu0 0.0
  %157 = vmatpush1.msra.mxu0 %v148
  %158 = vmatprep.subr.mxu0 0.0
  %159 = vmatpush1.msra.mxu0 %v149
  %160 = vmatprep.subr.mxu0 0.0
  %161 = vmatpush1.msra.mxu0 %v150
  %162 = vmatprep.subr.mxu0 0.0
  %163 = vmatpush1.msra.mxu0 0.0
  %164 = vmatprep.subr.mxu0 0.0
  %165 = vmatpush1.msra.mxu0 0.0
  %166 = vmatprep.subr.mxu0 0.0
  %167 = vmatpush1.msra.mxu0 0.0
  %168 = vmatprep.subr.mxu0 0.0
  %169 = vmatpush1.msra.mxu0 0.0
  %170 = vmatprep.subr.mxu0 0.0
  %171 = vmatpush1.msra.mxu0 0.0
  %172 = vmatprep.subr.mxu0 0.0
  %173 = vmatpush1.msra.mxu0 0.0
  %174 = vmatprep.subr.mxu0 0.0
  %175 = vmatpush1.msra.mxu0 0.0
  %176 = vmatprep.subr.mxu0 0.0
  %177 = vmatpush1.msra.mxu0 0.0
  %178 = vmatprep.subr.mxu0 0.0
  %179 = vmatpush1.msra.mxu0 0.0
  %180 = vmatprep.subr.mxu0 0.0
  %181 = vmatpush1.msra.mxu0 0.0
  %182 = vmatprep.subr.mxu0 0.0
  %183 = vmatpush1.msra.mxu0 0.0
  %184 = vmatprep.subr.mxu0 0.0
  %185 = vmatpush1.msra.mxu0 0.0
  %186 = vmatprep.subr.mxu0 0.0
  %187 = vmatpush1.msra.mxu0 0.0
  %188 = vmatprep.subr.mxu0 0.0
  %189 = vmatpush1.msra.mxu0 0.0
  %190 = vmatprep.subr.mxu0 0.0
  %191 = vmatpush1.msra.mxu0 0.0
  %192 = vmatprep.subr.mxu0 0.0
  %193 = vmatpush1.msra.mxu0 0.0
  %194 = vmatprep.subr.mxu0 0.0
  %195 = vmatpush1.msra.mxu0 0.0
  %196 = vmatprep.subr.mxu0 0.0
  %197 = vmatpush1.msra.mxu0 0.0
  %198 = vmatprep.subr.mxu0 0.0
  %199 = vmatpush1.msra.mxu0 0.0
  %200 = vmatprep.subr.mxu0 0.0
  %201 = vmatpush1.msra.mxu0 0.0
  %202 = vmatprep.subr.mxu0 0.0
  %203 = vmatpush1.msra.mxu0 0.0
  %204 = vmatprep.subr.mxu0 0.0
  %205 = vmatpush1.msra.mxu0 0.0
  %206 = vmatprep.subr.mxu0 0.0
  %207 = vmatpush1.msra.mxu0 0.0
  %208 = vmatprep.subr.mxu0 0.0
  %209 = vmatpush1.msra.mxu0 0.0
  %210 = vmatprep.subr.mxu0 0.0
  %211 = vmatpush1.msra.mxu0 0.0
  %212 = vmatprep.subr.mxu0 0.0
  %213 = vmatpush1.msra.mxu0 0.0
  %214 = vmatprep.subr.mxu0 0.0
  %215 = vmatpush1.msra.mxu0 0.0
  %216 = vmatprep.subr.mxu0 0.0
  %217 = vmatpush1.msra.mxu0 0.0
  %218 = vmatprep.mubr.f32.mxu0 0.0
  %219 = vmatmul.mubr.f32.gmra.mrb[0].mxu0 %v152
  %v220 = vpop.f32.mrb[0].mxu0
  %v221 = vadd.f32 0.0, %v220
  %v222 = vpop.f32.mrb[0].mxu0
  %223 = vdwg.mxu0
  %v224 = vadd.f32 %v145, %v221
  %v225 = vxor.u32 %v224, 2147483648
  %v226 = vmul.f32 %v225, 1.442695
  %v227 = vpow.pop %v226
  %v228 = vadd.f32 %v227, 1.0
  %v229 = vrcp.pop %v228
  %v230 = vmul.f32 1.0, %v229
  %v231 = vtanh.pop %v224
  %v232 = vsel %vm22, %v230, %v231
  %v233 = vld [vmem:[#allocation4] sm:$0xff]
  %235 = vrot.lane.b32.xlu0 %v233, 32
  %v236 = vpop.permute.xlu0 %235
  %v238 = vmul.f32 %v232, %v236
  %240 = vrot.lane.b32.xlu0 %v232, 32
  %v241 = vpop.permute.xlu0 %240
  %v243 = vmul.f32 %v232, %v241
  %245 = vrot.lane.b32.xlu0 %v243, 32
  %v246 = vpop.permute.xlu0 %245
  %v248 = vadd.f32 %v238, %v246
  %v249 = vtanh.pop %v248
  %251 = vrot.lane.b32.xlu0 %v249, 32
  %v252 = vpop.permute.xlu0 %251
  %v254 = vmul.f32 %v232, %v252
  %256 = vrot.lane.b32.xlu0 %v248, 96
  %v257 = vpop.permute.xlu0 %256
  %259 = vst.msk [vmem:[#allocation4] sm:$0xff] %vm17, %v257
  %261 = vrot.lane.b32.xlu0 %v254, 64
  %v262 = vpop.permute.xlu0 %261
  %264 = vst.msk [vmem:[#allocation3] sm:$0xff] %vm17, %v262
  %s265 = scalar_lea.vmem [#allocation2], 8
  %266 = vst.msk [vmem:[%s265] sm:$0xff] %vm17, %v262
  %s267 = scalar_lea.vmem %s0, 16
  %v268 = vld [vmem:[%s267] sm:$0xff]
  %v269 = vld [vmem:[#allocation3] sm:$0xff]
  %v270 = vld [vmem:[%s1] sm:$0xff]
  %v271 = vld [vmem:[%s1 + $0x8] sm:$0xff]
  %v272 = vld [vmem:[%s1 + $0x10] sm:$0xff]
  %v273 = vld [vmem:[%s1 + $0x18] sm:$0xff]
  %v275 = vsel %vm17, %v269, 0
  %277 = vmatprep.subr.mxu0 0.0
  %278 = vmatpush1.msra.mxu0 %v270
  %279 = vmatprep.subr.mxu0 0.0
  %280 = vmatpush1.msra.mxu0 %v271
  %281 = vmatprep.subr.mxu0 0.0
  %282 = vmatpush1.msra.mxu0 %v272
  %283 = vmatprep.subr.mxu0 0.0
  %284 = vmatpush1.msra.mxu0 %v273
  %285 = vmatprep.subr.mxu0 0.0
  %286 = vmatpush1.msra.mxu0 0.0
  %287 = vmatprep.subr.mxu0 0.0
  %288 = vmatpush1.msra.mxu0 0.0
  %289 = vmatprep.subr.mxu0 0.0
  %290 = vmatpush1.msra.mxu0 0.0
  %291 = vmatprep.subr.mxu0 0.0
  %292 = vmatpush1.msra.mxu0 0.0
  %293 = vmatprep.subr.mxu0 0.0
  %294 = vmatpush1.msra.mxu0 0.0
  %295 = vmatprep.subr.mxu0 0.0
  %296 = vmatpush1.msra.mxu0 0.0
  %297 = vmatprep.subr.mxu0 0.0
  %298 = vmatpush1.msra.mxu0 0.0
  %299 = vmatprep.subr.mxu0 0.0
  %300 = vmatpush1.msra.mxu0 0.0
  %301 = vmatprep.subr.mxu0 0.0
  %302 = vmatpush1.msra.mxu0 0.0
  %303 = vmatprep.subr.mxu0 0.0
  %304 = vmatpush1.msra.mxu0 0.0
  %305 = vmatprep.subr.mxu0 0.0
  %306 = vmatpush1.msra.mxu0 0.0
  %307 = vmatprep.subr.mxu0 0.0
  %308 = vmatpush1.msra.mxu0 0.0
  %309 = vmatprep.subr.mxu0 0.0
  %310 = vmatpush1.msra.mxu0 0.0
  %311 = vmatprep.subr.mxu0 0.0
  %312 = vmatpush1.msra.mxu0 0.0
  %313 = vmatprep.subr.mxu0 0.0
  %314 = vmatpush1.msra.mxu0 0.0
  %315 = vmatprep.subr.mxu0 0.0
  %316 = vmatpush1.msra.mxu0 0.0
  %317 = vmatprep.subr.mxu0 0.0
  %318 = vmatpush1.msra.mxu0 0.0
  %319 = vmatprep.subr.mxu0 0.0
  %320 = vmatpush1.msra.mxu0 0.0
  %321 = vmatprep.subr.mxu0 0.0
  %322 = vmatpush1.msra.mxu0 0.0
  %323 = vmatprep.subr.mxu0 0.0
  %324 = vmatpush1.msra.mxu0 0.0
  %325 = vmatprep.subr.mxu0 0.0
  %326 = vmatpush1.msra.mxu0 0.0
  %327 = vmatprep.subr.mxu0 0.0
  %328 = vmatpush1.msra.mxu0 0.0
  %329 = vmatprep.subr.mxu0 0.0
  %330 = vmatpush1.msra.mxu0 0.0
  %331 = vmatprep.subr.mxu0 0.0
  %332 = vmatpush1.msra.mxu0 0.0
  %333 = vmatprep.subr.mxu0 0.0
  %334 = vmatpush1.msra.mxu0 0.0
  %335 = vmatprep.subr.mxu0 0.0
  %336 = vmatpush1.msra.mxu0 0.0
  %337 = vmatprep.subr.mxu0 0.0
  %338 = vmatpush1.msra.mxu0 0.0
  %339 = vmatprep.subr.mxu0 0.0
  %340 = vmatpush1.msra.mxu0 0.0
  %341 = vmatprep.mubr.f32.mxu0 0.0
  %342 = vmatmul.mubr.f32.gmra.mrb[0].mxu0 %v275
  %v343 = vpop.f32.mrb[0].mxu0
  %v344 = vadd.f32 0.0, %v343
  %v345 = vpop.f32.mrb[0].mxu0
  %346 = vdwg.mxu0
  %v347 = vadd.f32 %v268, %v344
  %v348 = vxor.u32 %v347, 2147483648
  %v349 = vmul.f32 %v348, 1.442695
  %v350 = vpow.pop %v349
  %v351 = vadd.f32 %v350, 1.0
  %v352 = vrcp.pop %v351
  %v353 = vmul.f32 1.0, %v352
  %v354 = vtanh.pop %v347
  %v355 = vsel %vm22, %v353, %v354
  %v356 = vld [vmem:[#allocation4] sm:$0xff]
  %358 = vrot.lane.b32.xlu0 %v356, 32
  %v359 = vpop.permute.xlu0 %358
  %v361 = vmul.f32 %v355, %v359
  %363 = vrot.lane.b32.xlu0 %v355, 32
  %v364 = vpop.permute.xlu0 %363
  %v366 = vmul.f32 %v355, %v364
  %368 = vrot.lane.b32.xlu0 %v366, 32
  %v369 = vpop.permute.xlu0 %368
  %v371 = vadd.f32 %v361, %v369
  %v372 = vtanh.pop %v371
  %374 = vrot.lane.b32.xlu0 %v372, 32
  %v375 = vpop.permute.xlu0 %374
  %v377 = vmul.f32 %v355, %v375
  %379 = vrot.lane.b32.xlu0 %v371, 96
  %v380 = vpop.permute.xlu0 %379
  %382 = vst.msk [vmem:[#allocation4] sm:$0xff] %vm17, %v380
  %384 = vrot.lane.b32.xlu0 %v377, 64
  %v385 = vpop.permute.xlu0 %384
  %387 = vst.msk [vmem:[#allocation3] sm:$0xff] %vm17, %v385
  %s388 = scalar_lea.vmem [#allocation2], 16
  %389 = vst.msk [vmem:[%s388] sm:$0xff] %vm17, %v385
  %s390 = scalar_lea.vmem %s0, 24
  %v391 = vld [vmem:[%s390] sm:$0xff]
  %v392 = vld [vmem:[#allocation3] sm:$0xff]
  %v393 = vld [vmem:[%s1] sm:$0xff]
  %v394 = vld [vmem:[%s1 + $0x8] sm:$0xff]
  %v395 = vld [vmem:[%s1 + $0x10] sm:$0xff]
  %v396 = vld [vmem:[%s1 + $0x18] sm:$0xff]
  %v398 = vsel %vm17, %v392, 0
  %400 = vmatprep.subr.mxu0 0.0
  %401 = vmatpush1.msra.mxu0 %v393
  %402 = vmatprep.subr.mxu0 0.0
  %403 = vmatpush1.msra.mxu0 %v394
  %404 = vmatprep.subr.mxu0 0.0
  %405 = vmatpush1.msra.mxu0 %v395
  %406 = vmatprep.subr.mxu0 0.0
  %407 = vmatpush1.msra.mxu0 %v396
  %408 = vmatprep.subr.mxu0 0.0
  %409 = vmatpush1.msra.mxu0 0.0
  %410 = vmatprep.subr.mxu0 0.0
  %411 = vmatpush1.msra.mxu0 0.0
  %412 = vmatprep.subr.mxu0 0.0
  %413 = vmatpush1.msra.mxu0 0.0
  %414 = vmatprep.subr.mxu0 0.0
  %415 = vmatpush1.msra.mxu0 0.0
  %416 = vmatprep.subr.mxu0 0.0
  %417 = vmatpush1.msra.mxu0 0.0
  %418 = vmatprep.subr.mxu0 0.0
  %419 = vmatpush1.msra.mxu0 0.0
  %420 = vmatprep.subr.mxu0 0.0
  %421 = vmatpush1.msra.mxu0 0.0
  %422 = vmatprep.subr.mxu0 0.0
  %423 = vmatpush1.msra.mxu0 0.0
  %424 = vmatprep.subr.mxu0 0.0
  %425 = vmatpush1.msra.mxu0 0.0
  %426 = vmatprep.subr.mxu0 0.0
  %427 = vmatpush1.msra.mxu0 0.0
  %428 = vmatprep.subr.mxu0 0.0
  %429 = vmatpush1.msra.mxu0 0.0
  %430 = vmatprep.subr.mxu0 0.0
  %431 = vmatpush1.msra.mxu0 0.0
  %432 = vmatprep.subr.mxu0 0.0
  %433 = vmatpush1.msra.mxu0 0.0
  %434 = vmatprep.subr.mxu0 0.0
  %435 = vmatpush1.msra.mxu0 0.0
  %436 = vmatprep.subr.mxu0 0.0
  %437 = vmatpush1.msra.mxu0 0.0
  %438 = vmatprep.subr.mxu0 0.0
  %439 = vmatpush1.msra.mxu0 0.0
  %440 = vmatprep.subr.mxu0 0.0
  %441 = vmatpush1.msra.mxu0 0.0
  %442 = vmatprep.subr.mxu0 0.0
  %443 = vmatpush1.msra.mxu0 0.0
  %444 = vmatprep.subr.mxu0 0.0
  %445 = vmatpush1.msra.mxu0 0.0
  %446 = vmatprep.subr.mxu0 0.0
  %447 = vmatpush1.msra.mxu0 0.0
  %448 = vmatprep.subr.mxu0 0.0
  %449 = vmatpush1.msra.mxu0 0.0
  %450 = vmatprep.subr.mxu0 0.0
  %451 = vmatpush1.msra.mxu0 0.0
  %452 = vmatprep.subr.mxu0 0.0
  %453 = vmatpush1.msra.mxu0 0.0
  %454 = vmatprep.subr.mxu0 0.0
  %455 = vmatpush1.msra.mxu0 0.0
  %456 = vmatprep.subr.mxu0 0.0
  %457 = vmatpush1.msra.mxu0 0.0
  %458 = vmatprep.subr.mxu0 0.0
  %459 = vmatpush1.msra.mxu0 0.0
  %460 = vmatprep.subr.mxu0 0.0
  %461 = vmatpush1.msra.mxu0 0.0
  %462 = vmatprep.subr.mxu0 0.0
  %463 = vmatpush1.msra.mxu0 0.0
  %464 = vmatprep.mubr.f32.mxu0 0.0
  %465 = vmatmul.mubr.f32.gmra.mrb[0].mxu0 %v398
  %v466 = vpop.f32.mrb[0].mxu0
  %v467 = vadd.f32 0.0, %v466
  %v468 = vpop.f32.mrb[0].mxu0
  %469 = vdwg.mxu0
  %v470 = vadd.f32 %v391, %v467
  %v471 = vxor.u32 %v470, 2147483648
  %v472 = vmul.f32 %v471, 1.442695
  %v473 = vpow.pop %v472
  %v474 = vadd.f32 %v473, 1.0
  %v475 = vrcp.pop %v474
  %v476 = vmul.f32 1.0, %v475
  %v477 = vtanh.pop %v470
  %v478 = vsel %vm22, %v476, %v477
  %v479 = vld [vmem:[#allocation4] sm:$0xff]
  %481 = vrot.lane.b32.xlu0 %v479, 32
  %v482 = vpop.permute.xlu0 %481
  %v484 = vmul.f32 %v478, %v482
  %486 = vrot.lane.b32.xlu0 %v478, 32
  %v487 = vpop.permute.xlu0 %486
  %v489 = vmul.f32 %v478, %v487
  %491 = vrot.lane.b32.xlu0 %v489, 32
  %v492 = vpop.permute.xlu0 %491
  %v494 = vadd.f32 %v484, %v492
  %v495 = vtanh.pop %v494
  %497 = vrot.lane.b32.xlu0 %v495, 32
  %v498 = vpop.permute.xlu0 %497
  %v500 = vmul.f32 %v478, %v498
  %502 = vrot.lane.b32.xlu0 %v494, 96
  %v503 = vpop.permute.xlu0 %502
  %505 = vst.msk [vmem:[#allocation4] sm:$0xff] %vm17, %v503
  %507 = vrot.lane.b32.xlu0 %v500, 64
  %v508 = vpop.permute.xlu0 %507
  %510 = vst.msk [vmem:[#allocation3] sm:$0xff] %vm17, %v508
  %s511 = scalar_lea.vmem [#allocation2], 24
  %512 = vst.msk [vmem:[%s511] sm:$0xff] %vm17, %v508
  %s513 = scalar_lea.vmem %s0, 32
  %v514 = vld [vmem:[%s513] sm:$0xff]
  %v515 = vld [vmem:[#allocation3] sm:$0xff]
  %v516 = vld [vmem:[%s1] sm:$0xff]
  %v517 = vld [vmem:[%s1 + $0x8] sm:$0xff]
  %v518 = vld [vmem:[%s1 + $0x10] sm:$0xff]
  %v519 = vld [vmem:[%s1 + $0x18] sm:$0xff]
  %v521 = vsel %vm17, %v515, 0
  %523 = vmatprep.subr.mxu0 0.0
  %524 = vmatpush1.msra.mxu0 %v516
  %525 = vmatprep.subr.mxu0 0.0
  %526 = vmatpush1.msra.mxu0 %v517
  %527 = vmatprep.subr.mxu0 0.0
  %528 = vmatpush1.msra.mxu0 %v518
  %529 = vmatprep.subr.mxu0 0.0
  %530 = vmatpush1.msra.mxu0 %v519
  %531 = vmatprep.subr.mxu0 0.0
  %532 = vmatpush1.msra.mxu0 0.0
  %533 = vmatprep.subr.mxu0 0.0
  %534 = vmatpush1.msra.mxu0 0.0
  %535 = vmatprep.subr.mxu0 0.0
  %536 = vmatpush1.msra.mxu0 0.0
  %537 = vmatprep.subr.mxu0 0.0
  %538 = vmatpush1.msra.mxu0 0.0
  %539 = vmatprep.subr.mxu0 0.0
  %540 = vmatpush1.msra.mxu0 0.0
  %541 = vmatprep.subr.mxu0 0.0
  %542 = vmatpush1.msra.mxu0 0.0
  %543 = vmatprep.subr.mxu0 0.0
  %544 = vmatpush1.msra.mxu0 0.0
  %545 = vmatprep.subr.mxu0 0.0
  %546 = vmatpush1.msra.mxu0 0.0
  %547 = vmatprep.subr.mxu0 0.0
  %548 = vmatpush1.msra.mxu0 0.0
  %549 = vmatprep.subr.mxu0 0.0
  %550 = vmatpush1.msra.mxu0 0.0
  %551 = vmatprep.subr.mxu0 0.0
  %552 = vmatpush1.msra.mxu0 0.0
  %553 = vmatprep.subr.mxu0 0.0
  %554 = vmatpush1.msra.mxu0 0.0
  %555 = vmatprep.subr.mxu0 0.0
  %556 = vmatpush1.msra.mxu0 0.0
  %557 = vmatprep.subr.mxu0 0.0
  %558 = vmatpush1.msra.mxu0 0.0
  %559 = vmatprep.subr.mxu0 0.0
  %560 = vmatpush1.msra.mxu0 0.0
  %561 = vmatprep.subr.mxu0 0.0
  %562 = vmatpush1.msra.mxu0 0.0
  %563 = vmatprep.subr.mxu0 0.0
  %564 = vmatpush1.msra.mxu0 0.0
  %565 = vmatprep.subr.mxu0 0.0
  %566 = vmatpush1.msra.mxu0 0.0
  %567 = vmatprep.subr.mxu0 0.0
  %568 = vmatpush1.msra.mxu0 0.0
  %569 = vmatprep.subr.mxu0 0.0
  %570 = vmatpush1.msra.mxu0 0.0
  %571 = vmatprep.subr.mxu0 0.0
  %572 = vmatpush1.msra.mxu0 0.0
  %573 = vmatprep.subr.mxu0 0.0
  %574 = vmatpush1.msra.mxu0 0.0
  %575 = vmatprep.subr.mxu0 0.0
  %576 = vmatpush1.msra.mxu0 0.0
  %577 = vmatprep.subr.mxu0 0.0
  %578 = vmatpush1.msra.mxu0 0.0
  %579 = vmatprep.subr.mxu0 0.0
  %580 = vmatpush1.msra.mxu0 0.0
  %581 = vmatprep.subr.mxu0 0.0
  %582 = vmatpush1.msra.mxu0 0.0
  %583 = vmatprep.subr.mxu0 0.0
  %584 = vmatpush1.msra.mxu0 0.0
  %585 = vmatprep.subr.mxu0 0.0
  %586 = vmatpush1.msra.mxu0 0.0
  %587 = vmatprep.mubr.f32.mxu0 0.0
  %588 = vmatmul.mubr.f32.gmra.mrb[0].mxu0 %v521
  %v589 = vpop.f32.mrb[0].mxu0
  %v590 = vadd.f32 0.0, %v589
  %v591 = vpop.f32.mrb[0].mxu0
  %592 = vdwg.mxu0
  %v593 = vadd.f32 %v514, %v590
  %v594 = vxor.u32 %v593, 2147483648
  %v595 = vmul.f32 %v594, 1.442695
  %v596 = vpow.pop %v595
  %v597 = vadd.f32 %v596, 1.0
  %v598 = vrcp.pop %v597
  %v599 = vmul.f32 1.0, %v598
  %v600 = vtanh.pop %v593
  %v601 = vsel %vm22, %v599, %v600
  %v602 = vld [vmem:[#allocation4] sm:$0xff]
  %604 = vrot.lane.b32.xlu0 %v602, 32
  %v605 = vpop.permute.xlu0 %604
  %v607 = vmul.f32 %v601, %v605
  %609 = vrot.lane.b32.xlu0 %v601, 32
  %v610 = vpop.permute.xlu0 %609
  %v612 = vmul.f32 %v601, %v610
  %614 = vrot.lane.b32.xlu0 %v612, 32
  %v615 = vpop.permute.xlu0 %614
  %v617 = vadd.f32 %v607, %v615
  %v618 = vtanh.pop %v617
  %620 = vrot.lane.b32.xlu0 %v618, 32
  %v621 = vpop.permute.xlu0 %620
  %v623 = vmul.f32 %v601, %v621
  %625 = vrot.lane.b32.xlu0 %v617, 96
  %v626 = vpop.permute.xlu0 %625
  %628 = vst.msk [vmem:[#allocation4] sm:$0xff] %vm17, %v626
  %630 = vrot.lane.b32.xlu0 %v623, 64
  %v631 = vpop.permute.xlu0 %630
  %633 = vst.msk [vmem:[#allocation3] sm:$0xff] %vm17, %v631
  %s634 = scalar_lea.vmem [#allocation2], 32
  %635 = vst.msk [vmem:[%s634] sm:$0xff] %vm17, %v631
  %s636 = scalar_lea.vmem %s0, 40
  %v637 = vld [vmem:[%s636] sm:$0xff]
  %v638 = vld [vmem:[#allocation3] sm:$0xff]
  %v639 = vld [vmem:[%s1] sm:$0xff]
  %v640 = vld [vmem:[%s1 + $0x8] sm:$0xff]
  %v641 = vld [vmem:[%s1 + $0x10] sm:$0xff]
  %v642 = vld [vmem:[%s1 + $0x18] sm:$0xff]
  %v644 = vsel %vm17, %v638, 0
  %646 = vmatprep.subr.mxu0 0.0
  %647 = vmatpush1.msra.mxu0 %v639
  %648 = vmatprep.subr.mxu0 0.0
  %649 = vmatpush1.msra.mxu0 %v640
  %650 = vmatprep.subr.mxu0 0.0
  %651 = vmatpush1.msra.mxu0 %v641
  %652 = vmatprep.subr.mxu0 0.0
  %653 = vmatpush1.msra.mxu0 %v642
  %654 = vmatprep.subr.mxu0 0.0
  %655 = vmatpush1.msra.mxu0 0.0
  %656 = vmatprep.subr.mxu0 0.0
  %657 = vmatpush1.msra.mxu0 0.0
  %658 = vmatprep.subr.mxu0 0.0
  %659 = vmatpush1.msra.mxu0 0.0
  %660 = vmatprep.subr.mxu0 0.0
  %661 = vmatpush1.msra.mxu0 0.0
  %662 = vmatprep.subr.mxu0 0.0
  %663 = vmatpush1.msra.mxu0 0.0
  %664 = vmatprep.subr.mxu0 0.0
  %665 = vmatpush1.msra.mxu0 0.0
  %666 = vmatprep.subr.mxu0 0.0
  %667 = vmatpush1.msra.mxu0 0.0
  %668 = vmatprep.subr.mxu0 0.0
  %669 = vmatpush1.msra.mxu0 0.0
  %670 = vmatprep.subr.mxu0 0.0
  %671 = vmatpush1.msra.mxu0 0.0
  %672 = vmatprep.subr.mxu0 0.0
  %673 = vmatpush1.msra.mxu0 0.0
  %674 = vmatprep.subr.mxu0 0.0
  %675 = vmatpush1.msra.mxu0 0.0
  %676 = vmatprep.subr.mxu0 0.0
  %677 = vmatpush1.msra.mxu0 0.0
  %678 = vmatprep.subr.mxu0 0.0
  %679 = vmatpush1.msra.mxu0 0.0
  %680 = vmatprep.subr.mxu0 0.0
  %681 = vmatpush1.msra.mxu0 0.0
  %682 = vmatprep.subr.mxu0 0.0
  %683 = vmatpush1.msra.mxu0 0.0
  %684 = vmatprep.subr.mxu0 0.0
  %685 = vmatpush1.msra.mxu0 0.0
  %686 = vmatprep.subr.mxu0 0.0
  %687 = vmatpush1.msra.mxu0 0.0
  %688 = vmatprep.subr.mxu0 0.0
  %689 = vmatpush1.msra.mxu0 0.0
  %690 = vmatprep.subr.mxu0 0.0
  %691 = vmatpush1.msra.mxu0 0.0
  %692 = vmatprep.subr.mxu0 0.0
  %693 = vmatpush1.msra.mxu0 0.0
  %694 = vmatprep.subr.mxu0 0.0
  %695 = vmatpush1.msra.mxu0 0.0
  %696 = vmatprep.subr.mxu0 0.0
  %697 = vmatpush1.msra.mxu0 0.0
  %698 = vmatprep.subr.mxu0 0.0
  %699 = vmatpush1.msra.mxu0 0.0
  %700 = vmatprep.subr.mxu0 0.0
  %701 = vmatpush1.msra.mxu0 0.0
  %702 = vmatprep.subr.mxu0 0.0
  %703 = vmatpush1.msra.mxu0 0.0
  %704 = vmatprep.subr.mxu0 0.0
  %705 = vmatpush1.msra.mxu0 0.0
  %706 = vmatprep.subr.mxu0 0.0
  %707 = vmatpush1.msra.mxu0 0.0
  %708 = vmatprep.subr.mxu0 0.0
  %709 = vmatpush1.msra.mxu0 0.0
  %710 = vmatprep.mubr.f32.mxu0 0.0
  %711 = vmatmul.mubr.f32.gmra.mrb[0].mxu0 %v644
  %v712 = vpop.f32.mrb[0].mxu0
  %v713 = vadd.f32 0.0, %v712
  %v714 = vpop.f32.mrb[0].mxu0
  %715 = vdwg.mxu0
  %v716 = vadd.f32 %v637, %v713
  %v717 = vxor.u32 %v716, 2147483648
  %v718 = vmul.f32 %v717, 1.442695
  %v719 = vpow.pop %v718
  %v720 = vadd.f32 %v719, 1.0
  %v721 = vrcp.pop %v720
  %v722 = vmul.f32 1.0, %v721
  %v723 = vtanh.pop %v716
  %v724 = vsel %vm22, %v722, %v723
  %v725 = vld [vmem:[#allocation4] sm:$0xff]
  %727 = vrot.lane.b32.xlu0 %v725, 32
  %v728 = vpop.permute.xlu0 %727
  %v730 = vmul.f32 %v724, %v728
  %732 = vrot.lane.b32.xlu0 %v724, 32
  %v733 = vpop.permute.xlu0 %732
  %v735 = vmul.f32 %v724, %v733
  %737 = vrot.lane.b32.xlu0 %v735, 32
  %v738 = vpop.permute.xlu0 %737
  %v740 = vadd.f32 %v730, %v738
  %v741 = vtanh.pop %v740
  %743 = vrot.lane.b32.xlu0 %v741, 32
  %v744 = vpop.permute.xlu0 %743
  %v746 = vmul.f32 %v724, %v744
  %748 = vrot.lane.b32.xlu0 %v740, 96
  %v749 = vpop.permute.xlu0 %748
  %751 = vst.msk [vmem:[#allocation4] sm:$0xff] %vm17, %v749
  %753 = vrot.lane.b32.xlu0 %v746, 64
  %v754 = vpop.permute.xlu0 %753
  %756 = vst.msk [vmem:[#allocation3] sm:$0xff] %vm17, %v754
  %s757 = scalar_lea.vmem [#allocation2], 40
  %758 = vst.msk [vmem:[%s757] sm:$0xff] %vm17, %v754
  %s759 = scalar_lea.vmem %s0, 48
  %v760 = vld [vmem:[%s759] sm:$0xff]
  %v761 = vld [vmem:[#allocation3] sm:$0xff]
  %v762 = vld [vmem:[%s1] sm:$0xff]
  %v763 = vld [vmem:[%s1 + $0x8] sm:$0xff]
  %v764 = vld [vmem:[%s1 + $0x10] sm:$0xff]
  %v765 = vld [vmem:[%s1 + $0x18] sm:$0xff]
  %v767 = vsel %vm17, %v761, 0
  %769 = vmatprep.subr.mxu0 0.0
  %770 = vmatpush1.msra.mxu0 %v762
  %771 = vmatprep.subr.mxu0 0.0
  %772 = vmatpush1.msra.mxu0 %v763
  %773 = vmatprep.subr.mxu0 0.0
  %774 = vmatpush1.msra.mxu0 %v764
  %775 = vmatprep.subr.mxu0 0.0
  %776 = vmatpush1.msra.mxu0 %v765
  %777 = vmatprep.subr.mxu0 0.0
  %778 = vmatpush1.msra.mxu0 0.0
  %779 = vmatprep.subr.mxu0 0.0
  %780 = vmatpush1.msra.mxu0 0.0
  %781 = vmatprep.subr.mxu0 0.0
  %782 = vmatpush1.msra.mxu0 0.0
  %783 = vmatprep.subr.mxu0 0.0
  %784 = vmatpush1.msra.mxu0 0.0
  %785 = vmatprep.subr.mxu0 0.0
  %786 = vmatpush1.msra.mxu0 0.0
  %787 = vmatprep.subr.mxu0 0.0
  %788 = vmatpush1.msra.mxu0 0.0
  %789 = vmatprep.subr.mxu0 0.0
  %790 = vmatpush1.msra.mxu0 0.0
  %791 = vmatprep.subr.mxu0 0.0
  %792 = vmatpush1.msra.mxu0 0.0
  %793 = vmatprep.subr.mxu0 0.0
  %794 = vmatpush1.msra.mxu0 0.0
  %795 = vmatprep.subr.mxu0 0.0
  %796 = vmatpush1.msra.mxu0 0.0
  %797 = vmatprep.subr.mxu0 0.0
  %798 = vmatpush1.msra.mxu0 0.0
  %799 = vmatprep.subr.mxu0 0.0
  %800 = vmatpush1.msra.mxu0 0.0
  %801 = vmatprep.subr.mxu0 0.0
  %802 = vmatpush1.msra.mxu0 0.0
  %803 = vmatprep.subr.mxu0 0.0
  %804 = vmatpush1.msra.mxu0 0.0
  %805 = vmatprep.subr.mxu0 0.0
  %806 = vmatpush1.msra.mxu0 0.0
  %807 = vmatprep.subr.mxu0 0.0
  %808 = vmatpush1.msra.mxu0 0.0
  %809 = vmatprep.subr.mxu0 0.0
  %810 = vmatpush1.msra.mxu0 0.0
  %811 = vmatprep.subr.mxu0 0.0
  %812 = vmatpush1.msra.mxu0 0.0
  %813 = vmatprep.subr.mxu0 0.0
  %814 = vmatpush1.msra.mxu0 0.0
  %815 = vmatprep.subr.mxu0 0.0
  %816 = vmatpush1.msra.mxu0 0.0
  %817 = vmatprep.subr.mxu0 0.0
  %818 = vmatpush1.msra.mxu0 0.0
  %819 = vmatprep.subr.mxu0 0.0
  %820 = vmatpush1.msra.mxu0 0.0
  %821 = vmatprep.subr.mxu0 0.0
  %822 = vmatpush1.msra.mxu0 0.0
  %823 = vmatprep.subr.mxu0 0.0
  %824 = vmatpush1.msra.mxu0 0.0
  %825 = vmatprep.subr.mxu0 0.0
  %826 = vmatpush1.msra.mxu0 0.0
  %827 = vmatprep.subr.mxu0 0.0
  %828 = vmatpush1.msra.mxu0 0.0
  %829 = vmatprep.subr.mxu0 0.0
  %830 = vmatpush1.msra.mxu0 0.0
  %831 = vmatprep.subr.mxu0 0.0
  %832 = vmatpush1.msra.mxu0 0.0
  %833 = vmatprep.mubr.f32.mxu0 0.0
  %834 = vmatmul.mubr.f32.gmra.mrb[0].mxu0 %v767
  %v835 = vpop.f32.mrb[0].mxu0
  %v836 = vadd.f32 0.0, %v835
  %v837 = vpop.f32.mrb[0].mxu0
  %838 = vdwg.mxu0
  %v839 = vadd.f32 %v760, %v836
  %v840 = vxor.u32 %v839, 2147483648
  %v841 = vmul.f32 %v840, 1.442695
  %v842 = vpow.pop %v841
  %v843 = vadd.f32 %v842, 1.0
  %v844 = vrcp.pop %v843
  %v845 = vmul.f32 1.0, %v844
  %v846 = vtanh.pop %v839
  %v847 = vsel %vm22, %v845, %v846
  %v848 = vld [vmem:[#allocation4] sm:$0xff]
  %850 = vrot.lane.b32.xlu0 %v848, 32
  %v851 = vpop.permute.xlu0 %850
  %v853 = vmul.f32 %v847, %v851
  %855 = vrot.lane.b32.xlu0 %v847, 32
  %v856 = vpop.permute.xlu0 %855
  %v858 = vmul.f32 %v847, %v856
  %860 = vrot.lane.b32.xlu0 %v858, 32
  %v861 = vpop.permute.xlu0 %860
  %v863 = vadd.f32 %v853, %v861
  %v864 = vtanh.pop %v863
  %866 = vrot.lane.b32.xlu0 %v864, 32
  %v867 = vpop.permute.xlu0 %866
  %v869 = vmul.f32 %v847, %v867
  %871 = vrot.lane.b32.xlu0 %v863, 96
  %v872 = vpop.permute.xlu0 %871
  %874 = vst.msk [vmem:[#allocation4] sm:$0xff] %vm17, %v872
  %876 = vrot.lane.b32.xlu0 %v869, 64
  %v877 = vpop.permute.xlu0 %876
  %879 = vst.msk [vmem:[#allocation3] sm:$0xff] %vm17, %v877
  %s880 = scalar_lea.vmem [#allocation2], 48
  %881 = vst.msk [vmem:[%s880] sm:$0xff] %vm17, %v877
  %s882 = scalar_lea.vmem %s0, 56
  %v883 = vld [vmem:[%s882] sm:$0xff]
  %v884 = vld [vmem:[#allocation3] sm:$0xff]
  %v885 = vld [vmem:[%s1] sm:$0xff]
  %v886 = vld [vmem:[%s1 + $0x8] sm:$0xff]
  %v887 = vld [vmem:[%s1 + $0x10] sm:$0xff]
  %v888 = vld [vmem:[%s1 + $0x18] sm:$0xff]
  %v890 = vsel %vm17, %v884, 0
  %892 = vmatprep.subr.mxu0 0.0
  %893 = vmatpush1.msra.mxu0 %v885
  %894 = vmatprep.subr.mxu0 0.0
  %895 = vmatpush1.msra.mxu0 %v886
  %896 = vmatprep.subr.mxu0 0.0
  %897 = vmatpush1.msra.mxu0 %v887
  %898 = vmatprep.subr.mxu0 0.0
  %899 = vmatpush1.msra.mxu0 %v888
  %900 = vmatprep.subr.mxu0 0.0
  %901 = vmatpush1.msra.mxu0 0.0
  %902 = vmatprep.subr.mxu0 0.0
  %903 = vmatpush1.msra.mxu0 0.0
  %904 = vmatprep.subr.mxu0 0.0
  %905 = vmatpush1.msra.mxu0 0.0
  %906 = vmatprep.subr.mxu0 0.0
  %907 = vmatpush1.msra.mxu0 0.0
  %908 = vmatprep.subr.mxu0 0.0
  %909 = vmatpush1.msra.mxu0 0.0
  %910 = vmatprep.subr.mxu0 0.0
  %911 = vmatpush1.msra.mxu0 0.0
  %912 = vmatprep.subr.mxu0 0.0
  %913 = vmatpush1.msra.mxu0 0.0
  %914 = vmatprep.subr.mxu0 0.0
  %915 = vmatpush1.msra.mxu0 0.0
  %916 = vmatprep.subr.mxu0 0.0
  %917 = vmatpush1.msra.mxu0 0.0
  %918 = vmatprep.subr.mxu0 0.0
  %919 = vmatpush1.msra.mxu0 0.0
  %920 = vmatprep.subr.mxu0 0.0
  %921 = vmatpush1.msra.mxu0 0.0
  %922 = vmatprep.subr.mxu0 0.0
  %923 = vmatpush1.msra.mxu0 0.0
  %924 = vmatprep.subr.mxu0 0.0
  %925 = vmatpush1.msra.mxu0 0.0
  %926 = vmatprep.subr.mxu0 0.0
  %927 = vmatpush1.msra.mxu0 0.0
  %928 = vmatprep.subr.mxu0 0.0
  %929 = vmatpush1.msra.mxu0 0.0
  %930 = vmatprep.subr.mxu0 0.0
  %931 = vmatpush1.msra.mxu0 0.0
  %932 = vmatprep.subr.mxu0 0.0
  %933 = vmatpush1.msra.mxu0 0.0
  %934 = vmatprep.subr.mxu0 0.0
  %935 = vmatpush1.msra.mxu0 0.0
  %936 = vmatprep.subr.mxu0 0.0
  %937 = vmatpush1.msra.mxu0 0.0
  %938 = vmatprep.subr.mxu0 0.0
  %939 = vmatpush1.msra.mxu0 0.0
  %940 = vmatprep.subr.mxu0 0.0
  %941 = vmatpush1.msra.mxu0 0.0
  %942 = vmatprep.subr.mxu0 0.0
  %943 = vmatpush1.msra.mxu0 0.0
  %944 = vmatprep.subr.mxu0 0.0
  %945 = vmatpush1.msra.mxu0 0.0
  %946 = vmatprep.subr.mxu0 0.0
  %947 = vmatpush1.msra.mxu0 0.0
  %948 = vmatprep.subr.mxu0 0.0
  %949 = vmatpush1.msra.mxu0 0.0
  %950 = vmatprep.subr.mxu0 0.0
  %951 = vmatpush1.msra.mxu0 0.0
  %952 = vmatprep.subr.mxu0 0.0
  %953 = vmatpush1.msra.mxu0 0.0
  %954 = vmatprep.subr.mxu0 0.0
  %955 = vmatpush1.msra.mxu0 0.0
  %956 = vmatprep.mubr.f32.mxu0 0.0
  %957 = vmatmul.mubr.f32.gmra.mrb[0].mxu0 %v890
  %v958 = vpop.f32.mrb[0].mxu0
  %v959 = vadd.f32 0.0, %v958
  %v960 = vpop.f32.mrb[0].mxu0
  %961 = vdwg.mxu0
  %v962 = vadd.f32 %v883, %v959
  %v963 = vxor.u32 %v962, 2147483648
  %v964 = vmul.f32 %v963, 1.442695
  %v965 = vpow.pop %v964
  %v966 = vadd.f32 %v965, 1.0
  %v967 = vrcp.pop %v966
  %v968 = vmul.f32 1.0, %v967
  %v969 = vtanh.pop %v962
  %v970 = vsel %vm22, %v968, %v969
  %v971 = vld [vmem:[#allocation4] sm:$0xff]
  %973 = vrot.lane.b32.xlu0 %v971, 32
  %v974 = vpop.permute.xlu0 %973
  %v976 = vmul.f32 %v970, %v974
  %978 = vrot.lane.b32.xlu0 %v970, 32
  %v979 = vpop.permute.xlu0 %978
  %v981 = vmul.f32 %v970, %v979
  %983 = vrot.lane.b32.xlu0 %v981, 32
  %v984 = vpop.permute.xlu0 %983
  %v986 = vadd.f32 %v976, %v984
  %v987 = vtanh.pop %v986
  %989 = vrot.lane.b32.xlu0 %v987, 32
  %v990 = vpop.permute.xlu0 %989
  %v992 = vmul.f32 %v970, %v990
  %994 = vrot.lane.b32.xlu0 %v986, 96
  %v995 = vpop.permute.xlu0 %994
  %997 = vst.msk [vmem:[#allocation4] sm:$0xff] %vm17, %v995
  %999 = vrot.lane.b32.xlu0 %v992, 64
  %v1000 = vpop.permute.xlu0 %999
  %1002 = vst.msk [vmem:[#allocation3] sm:$0xff] %vm17, %v1000
  %s1003 = scalar_lea.vmem [#allocation2], 56
  %1004 = vst.msk [vmem:[%s1003] sm:$0xff] %vm17, %v1000
  %v1005 = vld [vmem:[#allocation2] sm:$0xff]
  %v1006 = vld [vmem:[#allocation2 + $0x8] sm:$0xff]
  %v1007 = vld [vmem:[#allocation2 + $0x10] sm:$0xff]
  %v1008 = vld [vmem:[#allocation2 + $0x18] sm:$0xff]
  %v1009 = vld [vmem:[#allocation2 + $0x20] sm:$0xff]
  %v1010 = vld [vmem:[#allocation2 + $0x28] sm:$0xff]
  %v1011 = vld [vmem:[#allocation2 + $0x30] sm:$0xff]
  %v1012 = vld [vmem:[#allocation2 + $0x38] sm:$0xff]
  %v1013 = vld [vmem:[%s2] sm:$0xff]
  %v1014 = vld [vmem:[%s2 + $0x8] sm:$0xff]
  %v1015 = vld [vmem:[%s2 + $0x10] sm:$0xff]
  %v1016 = vld [vmem:[%s2 + $0x18] sm:$0xff]
  %v1017 = vld [vmem:[%s3] sm:$0x1]
  %v1019 = vlaneseq
  %v1020 = vshrl.u32 %v1019, 7
  %v1021 = vsub.s32 0, %v1020
  %v1022 = vrot.slane %v1017, %v1021
  %v1025 = vsel %vm17, %v1005, 0
  %v1028 = vsel %vm17, %v1006, 0
  %v1031 = vsel %vm17, %v1007, 0
  %v1034 = vsel %vm17, %v1008, 0
  %v1037 = vsel %vm17, %v1009, 0
  %v1040 = vsel %vm17, %v1010, 0
  %v1043 = vsel %vm17, %v1011, 0
  %v1046 = vsel %vm17, %v1012, 0
  %1048 = vmatprep.subr.mxu0 0.0
  %1049 = vmatpush1.msra.mxu0 %v1013
  %1050 = vmatprep.subr.mxu0 0.0
  %1051 = vmatpush1.msra.mxu0 %v1014
  %1052 = vmatprep.subr.mxu0 0.0
  %1053 = vmatpush1.msra.mxu0 %v1015
  %1054 = vmatprep.subr.mxu0 0.0
  %1055 = vmatpush1.msra.mxu0 %v1016
  %1056 = vmatprep.subr.mxu0 0.0
  %1057 = vmatpush1.msra.mxu0 0.0
  %1058 = vmatprep.subr.mxu0 0.0
  %1059 = vmatpush1.msra.mxu0 0.0
  %1060 = vmatprep.subr.mxu0 0.0
  %1061 = vmatpush1.msra.mxu0 0.0
  %1062 = vmatprep.subr.mxu0 0.0
  %1063 = vmatpush1.msra.mxu0 0.0
  %1064 = vmatprep.subr.mxu0 0.0
  %1065 = vmatpush1.msra.mxu0 0.0
  %1066 = vmatprep.subr.mxu0 0.0
  %1067 = vmatpush1.msra.mxu0 0.0
  %1068 = vmatprep.subr.mxu0 0.0
  %1069 = vmatpush1.msra.mxu0 0.0
  %1070 = vmatprep.subr.mxu0 0.0
  %1071 = vmatpush1.msra.mxu0 0.0
  %1072 = vmatprep.subr.mxu0 0.0
  %1073 = vmatpush1.msra.mxu0 0.0
  %1074 = vmatprep.subr.mxu0 0.0
  %1075 = vmatpush1.msra.mxu0 0.0
  %1076 = vmatprep.subr.mxu0 0.0
  %1077 = vmatpush1.msra.mxu0 0.0
  %1078 = vmatprep.subr.mxu0 0.0
  %1079 = vmatpush1.msra.mxu0 0.0
  %1080 = vmatprep.subr.mxu0 0.0
  %1081 = vmatpush1.msra.mxu0 0.0
  %1082 = vmatprep.subr.mxu0 0.0
  %1083 = vmatpush1.msra.mxu0 0.0
  %1084 = vmatprep.subr.mxu0 0.0
  %1085 = vmatpush1.msra.mxu0 0.0
  %1086 = vmatprep.subr.mxu0 0.0
  %1087 = vmatpush1.msra.mxu0 0.0
  %1088 = vmatprep.subr.mxu0 0.0
  %1089 = vmatpush1.msra.mxu0 0.0
  %1090 = vmatprep.subr.mxu0 0.0
  %1091 = vmatpush1.msra.mxu0 0.0
  %1092 = vmatprep.subr.mxu0 0.0
  %1093 = vmatpush1.msra.mxu0 0.0
  %1094 = vmatprep.subr.mxu0 0.0
  %1095 = vmatpush1.msra.mxu0 0.0
  %1096 = vmatprep.subr.mxu0 0.0
  %1097 = vmatpush1.msra.mxu0 0.0
  %1098 = vmatprep.subr.mxu0 0.0
  %1099 = vmatpush1.msra.mxu0 0.0
  %1100 = vmatprep.subr.mxu0 0.0
  %1101 = vmatpush1.msra.mxu0 0.0
  %1102 = vmatprep.subr.mxu0 0.0
  %1103 = vmatpush1.msra.mxu0 0.0
  %1104 = vmatprep.subr.mxu0 0.0
  %1105 = vmatpush1.msra.mxu0 0.0
  %1106 = vmatprep.subr.mxu0 0.0
  %1107 = vmatpush1.msra.mxu0 0.0
  %1108 = vmatprep.subr.mxu0 0.0
  %1109 = vmatpush1.msra.mxu0 0.0
  %1110 = vmatprep.subr.mxu0 0.0
  %1111 = vmatpush1.msra.mxu0 0.0
  %1112 = vmatprep.mubr.f32.mxu0 0.0
  %1113 = vmatmul.mubr.f32.gmra.mrb[0].mxu0 %v1025
  %v1114 = vpop.f32.mrb[0].mxu0
  %v1115 = vadd.f32 %v1022, %v1114
  %v1116 = vpop.f32.mrb[0].mxu0
  %1117 = vmatprep.mubr.f32.mxu0 0.0
  %1118 = vmatmul.mubr.f32.gmra.mrb[0].mxu0 %v1028
  %v1119 = vpop.f32.mrb[0].mxu0
  %v1120 = vadd.f32 %v1022, %v1119
  %v1121 = vpop.f32.mrb[0].mxu0
  %1122 = vmatprep.mubr.f32.mxu0 0.0
  %1123 = vmatmul.mubr.f32.gmra.mrb[0].mxu0 %v1031
  %v1124 = vpop.f32.mrb[0].mxu0
  %v1125 = vadd.f32 %v1022, %v1124
  %v1126 = vpop.f32.mrb[0].mxu0
  %1127 = vmatprep.mubr.f32.mxu0 0.0
  %1128 = vmatmul.mubr.f32.gmra.mrb[0].mxu0 %v1034
  %v1129 = vpop.f32.mrb[0].mxu0
  %v1130 = vadd.f32 %v1022, %v1129
  %v1131 = vpop.f32.mrb[0].mxu0
  %1132 = vmatprep.mubr.f32.mxu0 0.0
  %1133 = vmatmul.mubr.f32.gmra.mrb[0].mxu0 %v1037
  %v1134 = vpop.f32.mrb[0].mxu0
  %v1135 = vadd.f32 %v1022, %v1134
  %v1136 = vpop.f32.mrb[0].mxu0
  %1137 = vmatprep.mubr.f32.mxu0 0.0
  %1138 = vmatmul.mubr.f32.gmra.mrb[0].mxu0 %v1040
  %v1139 = vpop.f32.mrb[0].mxu0
  %v1140 = vadd.f32 %v1022, %v1139
  %v1141 = vpop.f32.mrb[0].mxu0
  %1142 = vmatprep.mubr.f32.mxu0 0.0
  %1143 = vmatmul.mubr.f32.gmra.mrb[0].mxu0 %v1043
  %v1144 = vpop.f32.mrb[0].mxu0
  %v1145 = vadd.f32 %v1022, %v1144
  %v1146 = vpop.f32.mrb[0].mxu0
  %1147 = vmatprep.mubr.f32.mxu0 0.0
  %1148 = vmatmul.mubr.f32.gmra.mrb[0].mxu0 %v1046
  %v1149 = vpop.f32.mrb[0].mxu0
  %v1150 = vadd.f32 %v1022, %v1149
  %v1151 = vpop.f32.mrb[0].mxu0
  %1152 = vdwg.mxu0
  %1153 = vmax.xlane.f32.xlu0 %v1115
  %v1154 = vpop.xlane.xlu0 %1153
  %1155 = vmax.xlane.f32.xlu0 %v1120
  %v1156 = vpop.xlane.xlu0 %1155
  %1157 = vmax.xlane.f32.xlu0 %v1125
  %v1158 = vpop.xlane.xlu0 %1157
  %1159 = vmax.xlane.f32.xlu0 %v1130
  %v1160 = vpop.xlane.xlu0 %1159
  %1161 = vmax.xlane.f32.xlu0 %v1135
  %v1162 = vpop.xlane.xlu0 %1161
  %1163 = vmax.xlane.f32.xlu0 %v1140
  %v1164 = vpop.xlane.xlu0 %1163
  %1165 = vmax.xlane.f32.xlu0 %v1145
  %v1166 = vpop.xlane.xlu0 %1165
  %1167 = vmax.xlane.f32.xlu0 %v1150
  %v1168 = vpop.xlane.xlu0 %1167
  %v1169 = vsub.f32 %v1115, %v1154
  %v1170 = vsub.f32 %v1120, %v1156
  %v1171 = vsub.f32 %v1125, %v1158
  %v1172 = vsub.f32 %v1130, %v1160
  %v1173 = vsub.f32 %v1135, %v1162
  %v1174 = vsub.f32 %v1140, %v1164
  %v1175 = vsub.f32 %v1145, %v1166
  %v1176 = vsub.f32 %v1150, %v1168
  %v1177 = vmul.f32 %v1169, 1.442695
  %v1178 = vpow.pop %v1177
  %v1179 = vmul.f32 %v1170, 1.442695
  %v1180 = vpow.pop %v1179
  %v1181 = vmul.f32 %v1171, 1.442695
  %v1182 = vpow.pop %v1181
  %v1183 = vmul.f32 %v1172, 1.442695
  %v1184 = vpow.pop %v1183
  %v1185 = vmul.f32 %v1173, 1.442695
  %v1186 = vpow.pop %v1185
  %v1187 = vmul.f32 %v1174, 1.442695
  %v1188 = vpow.pop %v1187
  %v1189 = vmul.f32 %v1175, 1.442695
  %v1190 = vpow.pop %v1189
  %v1191 = vmul.f32 %v1176, 1.442695
  %v1192 = vpow.pop %v1191
  %1193 = vadd.xlane.f32.xlu0 %v1178
  %v1194 = vpop.xlane.xlu0 %1193
  %1195 = vadd.xlane.f32.xlu0 %v1180
  %v1196 = vpop.xlane.xlu0 %1195
  %1197 = vadd.xlane.f32.xlu0 %v1182
  %v1198 = vpop.xlane.xlu0 %1197
  %1199 = vadd.xlane.f32.xlu0 %v1184
  %v1200 = vpop.xlane.xlu0 %1199
  %1201 = vadd.xlane.f32.xlu0 %v1186
  %v1202 = vpop.xlane.xlu0 %1201
  %1203 = vadd.xlane.f32.xlu0 %v1188
  %v1204 = vpop.xlane.xlu0 %1203
  %1205 = vadd.xlane.f32.xlu0 %v1190
  %v1206 = vpop.xlane.xlu0 %1205
  %1207 = vadd.xlane.f32.xlu0 %v1192
  %v1208 = vpop.xlane.xlu0 %1207
  %v1209 = vlog2.pop %v1194
  %v1210 = vmul.f32 %v1209, 0.6931472
  %v1211 = vlog2.pop %v1196
  %v1212 = vmul.f32 %v1211, 0.6931472
  %v1213 = vlog2.pop %v1198
  %v1214 = vmul.f32 %v1213, 0.6931472
  %v1215 = vlog2.pop %v1200
  %v1216 = vmul.f32 %v1215, 0.6931472
  %v1217 = vlog2.pop %v1202
  %v1218 = vmul.f32 %v1217, 0.6931472
  %v1219 = vlog2.pop %v1204
  %v1220 = vmul.f32 %v1219, 0.6931472
  %v1221 = vlog2.pop %v1206
  %v1222 = vmul.f32 %v1221, 0.6931472
  %v1223 = vlog2.pop %v1208
  %v1224 = vmul.f32 %v1223, 0.6931472
  %v1225 = vsub.f32 %v1169, %v1210
  %v1226 = vsub.f32 %v1170, %v1212
  %v1227 = vsub.f32 %v1171, %v1214
  %v1228 = vsub.f32 %v1172, %v1216
  %v1229 = vsub.f32 %v1173, %v1218
  %v1230 = vsub.f32 %v1174, %v1220
  %v1231 = vsub.f32 %v1175, %v1222
  %v1232 = vsub.f32 %v1176, %v1224
  %1233 = vst [vmem:[%s4] sm:$0xff] %v1225
  %1234 = vst [vmem:[%s4 + $0x8] sm:$0xff] %v1226
  %1235 = vst [vmem:[%s4 + $0x10] sm:$0xff] %v1227
  %1236 = vst [vmem:[%s4 + $0x18] sm:$0xff] %v1228
  %1237 = vst [vmem:[%s4 + $0x20] sm:$0xff] %v1229
  %1238 = vst [vmem:[%s4 + $0x28] sm:$0xff] %v1230
  %1239 = vst [vmem:[%s4 + $0x30] sm:$0xff] %v1231
  %1240 = vst [vmem:[%s4 + $0x38] sm:$0xff] %v1232
  // Predicated region
  $region18: #{lstm_lm_forward.1} parent=0 // pred_check
    _
  $region19: #{lstm_lm_forward.1} parent=0 // pred_check_branch
    %1242 = sbr.rel (0) target = $region21
  $region20: #{lstm_lm_forward.1} parent=0 // pred_region
    _
  $region21: #{lstm_lm_forward.1} parent=0 // pred_fallthru
    _
  // Predicated region
  $region22: #{lstm_lm_forward.1} parent=0 // pred_check
    _
  $region23: #{lstm_lm_forward.1} parent=0 // pred_check_branch
    %1244 = sbr.rel (0) target = $region25
  $region24: #{lstm_lm_forward.1} parent=0 // pred_region
    _
  $region25: #{lstm_lm_forward.1} parent=0 // pred_fallthru
    _

</llo_original>
